<compile_context>
chip_gen: v7x
topology: tpu7x:2x2x1
jax: 0.10.0
libtpu: 0.0.40
codegen_flags: <defaults>
</compile_context>

<pallas_src>
import functools

import jax
import jax.numpy as jnp
from jax.experimental import pallas as pl
from jax.experimental.pallas import tpu as pltpu

IN_DIM = 732
H1, H2, H3 = 128, 64, 12


def sdae_kernel(x_ref,
                w1_ref, b1_ref, w2_ref, b2_ref, w3_ref, b3_ref,   # encoder
                w4_ref, b4_ref, w5_ref, b5_ref, w6_ref, b6_ref,   # decoder
                enc_ref, dec_ref):
    bf16 = jnp.bfloat16
    f32 = jnp.float32

    # f32 rows straight from HBM; cast to bf16 for the MXU (cheap VPU work, hidden by DMA).
    x = x_ref[...].astype(bf16)                                        # (tile_b, 732)

    # ---- encoder: bf16 operands, f32 MXU accumulation, f32 bias/ReLU ----
    h = jnp.dot(x, w1_ref[...], preferred_element_type=f32) + b1_ref[...]
    h = jnp.maximum(h, 0.0).astype(bf16)
    h = jnp.dot(h, w2_ref[...], preferred_element_type=f32) + b2_ref[...]
    h = jnp.maximum(h, 0.0).astype(bf16)
    enc = jnp.dot(h, w3_ref[...], preferred_element_type=f32) + b3_ref[...]
    enc_ref[...] = enc                                                 # (tile_b, 12) f32

    # ---- decoder ----
    h = jnp.dot(enc.astype(bf16), w4_ref[...], preferred_element_type=f32) + b4_ref[...]
    h = jnp.maximum(h, 0.0).astype(bf16)
    h = jnp.dot(h, w5_ref[...], preferred_element_type=f32) + b5_ref[...]
    h = jnp.maximum(h, 0.0).astype(bf16)
    dec = jnp.dot(h, w6_ref[...], preferred_element_type=f32) + b6_ref[...]
    # sigmoid = 1 / (1 + exp(-z)): exp and approx reciprocal both use the EUP slot;
    # bf16 store halves the largest HBM write of the kernel.
    dec_ref[...] = pl.reciprocal(1.0 + jnp.exp(-dec), approx=True).astype(bf16)


def _pick_tile_b(batch):
    """Largest tile that still yields >= 8 grid steps (>= 4 per TensorCore on v7x),
    so Pallas double-buffering overlaps DMA with compute; falls back to 64 rows."""
    for t in (512, 256, 128, 64):
        if pl.cdiv(batch, t) >= 8:
            return t
    return 64


@functools.partial(jax.jit, static_argnames=("tile_b",))
def autoencoder_forward(x, params, *, tile_b=None):
    """x: (B, 732) float32. params: w1..w6 stored (in, out), b1..b6 stored (1, out).

    Returns (encoded (B, 12) float32, decoded (B, 732) bfloat16)."""
    B, F = x.shape
    assert F == IN_DIM
    if tile_b is None:
        tile_b = _pick_tile_b(B)
    assert tile_b % 16 == 0, "tile_b must be a multiple of 16 (bf16 sublane packing)"

    # Ragged last tile is handled by Pallas masked boundary loads/stores: each row is
    # independent, so garbage rows in the boundary block never contaminate valid rows
    # and their stores are discarded. No batch-padding copy needed.
    grid = (pl.cdiv(B, tile_b),)

    row_map = lambda i: (i, 0)
    rep_map = lambda i: (0, 0)

    weight_args, weight_specs = [], []
    for k in range(1, 7):
        w = params[f"w{k}"].astype(jnp.bfloat16)   # MXU-native operand dtype (tiny arrays)
        b = params[f"b{k}"].astype(jnp.float32)
        weight_args += [w, b]
        weight_specs += [pl.BlockSpec(w.shape, rep_map),
                         pl.BlockSpec(b.shape, rep_map)]

    out_shapes = (
        jax.ShapeDtypeStruct((B, H3), jnp.float32),       # encoded: unpadded, 48 B/row
        jax.ShapeDtypeStruct((B, IN_DIM), jnp.bfloat16),  # decoded: bf16 halves HBM writes
    )

    enc, dec = pl.pallas_call(
        sdae_kernel,
        out_shape=out_shapes,
        grid_spec=pltpu.PrefetchScalarGridSpec(
            num_scalar_prefetch=0,
            grid=grid,
            in_specs=[pl.BlockSpec((tile_b, IN_DIM), row_map)] + weight_specs,
            out_specs=[pl.BlockSpec((tile_b, H3), row_map),
                       pl.BlockSpec((tile_b, IN_DIM), row_map)],
        ),
        compiler_params=pltpu.CompilerParams(
            dimension_semantics=("parallel",),   # batch tiles shard across TCs (v7x)
            vmem_limit_bytes=32 * 1024 * 1024,   # <= ~10 MiB/step even at tile_b=512
        ),
    )(x, *weight_args)

    return enc, dec


def init_params(key):
    """PyTorch-style init U(-1/sqrt(fan_in), 1/sqrt(fan_in)).
    Weights stored pre-transposed as (in, out); biases as (1, out); all float32."""
    dims = [
        (IN_DIM, H1), (H1, H2), (H2, H3),   # encoder
        (H3, H2), (H2, H1), (H1, IN_DIM),   # decoder
    ]
    params = {}
    for idx, (fan_in, fan_out) in enumerate(dims, start=1):
        key, kw, kb = jax.random.split(key, 3)
        bound = 1.0 / (fan_in ** 0.5)
        params[f"w{idx}"] = jax.random.uniform(
            kw, (fan_in, fan_out), jnp.float32, minval=-bound, maxval=bound)
        params[f"b{idx}"] = jax.random.uniform(
            kb, (1, fan_out), jnp.float32, minval=-bound, maxval=bound)
    return params


def reference_forward(x, params, compute_dtype=jnp.float32):
    """Pure-JAX reference. compute_dtype=bf16 mirrors the kernel's matmul precision."""
    cd = compute_dtype

    def lin(h, w, b):
        return jnp.dot(h.astype(cd), w.astype(cd),
                       preferred_element_type=jnp.float32) + b

    h = jnp.maximum(lin(x, params["w1"], params["b1"]), 0.0)
    h = jnp.maximum(lin(h, params["w2"], params["b2"]), 0.0)
    enc = lin(h, params["w3"], params["b3"])
    h = jnp.maximum(lin(enc, params["w4"], params["b4"]), 0.0)
    h = jnp.maximum(lin(h, params["w5"], params["b5"]), 0.0)
    dec = jax.nn.sigmoid(lin(h, params["w6"], params["b6"]))
    return enc, dec


if __name__ == "__main__":
    key = jax.random.PRNGKey(0)
    key, kx = jax.random.split(key)

    B = 200  # deliberately NOT a multiple of tile_b: exercises the ragged last grid step
    x = jax.random.uniform(kx, (B, IN_DIM), jnp.float32)
    params = init_params(key)

    enc, dec = autoencoder_forward(x, params)
    enc, dec = jax.block_until_ready((enc, dec))
    assert enc.shape == (B, H3) and enc.dtype == jnp.float32
    assert dec.shape == (B, IN_DIM) and dec.dtype == jnp.bfloat16

    dec32 = dec.astype(jnp.float32)

    # Strict check against a reference using the same matmul math (bf16 operands, f32 acc).
    enc_bf, dec_bf = reference_forward(x, params, compute_dtype=jnp.bfloat16)
    assert jnp.allclose(enc, enc_bf, atol=2e-3, rtol=2e-3)
    # decoded tolerance covers bf16 storage (<~2e-3) + approx-reciprocal sigmoid
    assert jnp.allclose(dec32, dec_bf, atol=1e-2)

    # Loose sanity check against the exact float32 reference (bf16 rounding of operands).
    enc_f32, dec_f32 = reference_forward(x, params, compute_dtype=jnp.float32)
    assert float(jnp.max(jnp.abs(enc - enc_f32))) < 2.5e-1
    assert float(jnp.max(jnp.abs(dec32 - dec_f32))) < 5e-2

    print("KERNEL_OK")
</pallas_src>

<mosaic_0001>
module attributes {stable_mosaic.version = 11 : i64} {
  func.func @sdae_kernel(%arg0: i32, %arg1: memref<64x732xf32, #tpu.memory_space<vmem>>, %arg2: memref<732x128xbf16, #tpu.memory_space<vmem>>, %arg3: memref<1x128xf32, #tpu.memory_space<vmem>>, %arg4: memref<128x64xbf16, #tpu.memory_space<vmem>>, %arg5: memref<1x64xf32, #tpu.memory_space<vmem>>, %arg6: memref<64x12xbf16, #tpu.memory_space<vmem>>, %arg7: memref<1x12xf32, #tpu.memory_space<vmem>>, %arg8: memref<12x64xbf16, #tpu.memory_space<vmem>>, %arg9: memref<1x64xf32, #tpu.memory_space<vmem>>, %arg10: memref<64x128xbf16, #tpu.memory_space<vmem>>, %arg11: memref<1x128xf32, #tpu.memory_space<vmem>>, %arg12: memref<128x732xbf16, #tpu.memory_space<vmem>>, %arg13: memref<1x732xf32, #tpu.memory_space<vmem>>, %arg14: memref<64x12xf32, #tpu.memory_space<vmem>>, %arg15: memref<64x732xbf16, #tpu.memory_space<vmem>>) attributes {dimension_semantics = [#tpu.dimension_semantics<parallel>], iteration_bounds = array<i64: 4>, scalar_prefetch = 0 : i64, scratch_operands = 0 : i64, tpu.core_type = #tpu.core_type<tc>, window_params = [{transform_indices = @transform_0, window_bounds = array<i64: 64, 732>}, {pipeline_mode = #tpu.pipeline_mode<synchronous>, transform_indices = @transform_1, window_bounds = array<i64: 732, 128>}, {pipeline_mode = #tpu.pipeline_mode<synchronous>, transform_indices = @transform_2, window_bounds = array<i64: 1, 128>}, {pipeline_mode = #tpu.pipeline_mode<synchronous>, transform_indices = @transform_3, window_bounds = array<i64: 128, 64>}, {pipeline_mode = #tpu.pipeline_mode<synchronous>, transform_indices = @transform_4, window_bounds = array<i64: 1, 64>}, {pipeline_mode = #tpu.pipeline_mode<synchronous>, transform_indices = @transform_5, window_bounds = array<i64: 64, 12>}, {pipeline_mode = #tpu.pipeline_mode<synchronous>, transform_indices = @transform_6, window_bounds = array<i64: 1, 12>}, {pipeline_mode = #tpu.pipeline_mode<synchronous>, transform_indices = @transform_7, window_bounds = array<i64: 12, 64>}, {pipeline_mode = #tpu.pipeline_mode<synchronous>, transform_indices = @transform_8, window_bounds = array<i64: 1, 64>}, {pipeline_mode = #tpu.pipeline_mode<synchronous>, transform_indices = @transform_9, window_bounds = array<i64: 64, 128>}, {pipeline_mode = #tpu.pipeline_mode<synchronous>, transform_indices = @transform_10, window_bounds = array<i64: 1, 128>}, {pipeline_mode = #tpu.pipeline_mode<synchronous>, transform_indices = @transform_11, window_bounds = array<i64: 128, 732>}, {pipeline_mode = #tpu.pipeline_mode<synchronous>, transform_indices = @transform_12, window_bounds = array<i64: 1, 732>}, {transform_indices = @transform_13, window_bounds = array<i64: 64, 12>}, {transform_indices = @transform_14, window_bounds = array<i64: 64, 732>}]} {
    %c0 = arith.constant 0 : index
    %c0_0 = arith.constant 0 : index
    %0 = vector.load %arg1[%c0, %c0_0] : memref<64x732xf32, #tpu.memory_space<vmem>>, vector<64x732xf32>
    %1 = arith.truncf %0 : vector<64x732xf32> to vector<64x732xbf16>
    %c0_1 = arith.constant 0 : index
    %c0_2 = arith.constant 0 : index
    %2 = vector.load %arg2[%c0_1, %c0_2] : memref<732x128xbf16, #tpu.memory_space<vmem>>, vector<732x128xbf16>
    %cst = arith.constant dense<0.000000e+00> : vector<64x128xf32>
    %3 = tpu.matmul %1, %2, %cst {dimension_numbers = #tpu.dot_dimension_numbers<[1], [0], [0], [1], [0, 0, 1, 1], [], []>} : vector<64x732xbf16>, vector<732x128xbf16>, vector<64x128xf32> -> vector<64x128xf32>
    %c0_3 = arith.constant 0 : index
    %c0_4 = arith.constant 0 : index
    %4 = vector.load %arg3[%c0_3, %c0_4] : memref<1x128xf32, #tpu.memory_space<vmem>>, vector<1x128xf32>
    %5 = vector.broadcast %4 : vector<1x128xf32> to vector<64x128xf32>
    %6 = arith.addf %3, %5 : vector<64x128xf32>
    %cst_5 = arith.constant 0.000000e+00 : f32
    %7 = vector.broadcast %cst_5 : f32 to vector<64x128xf32>
    %8 = arith.maximumf %6, %7 : vector<64x128xf32>
    %9 = arith.truncf %8 : vector<64x128xf32> to vector<64x128xbf16>
    %c0_6 = arith.constant 0 : index
    %c0_7 = arith.constant 0 : index
    %10 = vector.load %arg4[%c0_6, %c0_7] : memref<128x64xbf16, #tpu.memory_space<vmem>>, vector<128x64xbf16>
    %cst_8 = arith.constant dense<0.000000e+00> : vector<64x64xf32>
    %11 = tpu.matmul %9, %10, %cst_8 {dimension_numbers = #tpu.dot_dimension_numbers<[1], [0], [0], [1], [0, 0, 1, 1], [], []>} : vector<64x128xbf16>, vector<128x64xbf16>, vector<64x64xf32> -> vector<64x64xf32>
    %c0_9 = arith.constant 0 : index
    %c0_10 = arith.constant 0 : index
    %12 = vector.load %arg5[%c0_9, %c0_10] : memref<1x64xf32, #tpu.memory_space<vmem>>, vector<1x64xf32>
    %13 = vector.broadcast %12 : vector<1x64xf32> to vector<64x64xf32>
    %14 = arith.addf %11, %13 : vector<64x64xf32>
    %cst_11 = arith.constant 0.000000e+00 : f32
    %15 = vector.broadcast %cst_11 : f32 to vector<64x64xf32>
    %16 = arith.maximumf %14, %15 : vector<64x64xf32>
    %17 = arith.truncf %16 : vector<64x64xf32> to vector<64x64xbf16>
    %c0_12 = arith.constant 0 : index
    %c0_13 = arith.constant 0 : index
    %18 = vector.load %arg6[%c0_12, %c0_13] : memref<64x12xbf16, #tpu.memory_space<vmem>>, vector<64x12xbf16>
    %cst_14 = arith.constant dense<0.000000e+00> : vector<64x12xf32>
    %19 = tpu.matmul %17, %18, %cst_14 {dimension_numbers = #tpu.dot_dimension_numbers<[1], [0], [0], [1], [0, 0, 1, 1], [], []>} : vector<64x64xbf16>, vector<64x12xbf16>, vector<64x12xf32> -> vector<64x12xf32>
    %c0_15 = arith.constant 0 : index
    %c0_16 = arith.constant 0 : index
    %20 = vector.load %arg7[%c0_15, %c0_16] : memref<1x12xf32, #tpu.memory_space<vmem>>, vector<1x12xf32>
    %21 = vector.broadcast %20 : vector<1x12xf32> to vector<64x12xf32>
    %22 = arith.addf %19, %21 : vector<64x12xf32>
    %c0_17 = arith.constant 0 : index
    %c0_18 = arith.constant 0 : index
    %23 = vector.load %arg14[%c0_17, %c0_18] : memref<64x12xf32, #tpu.memory_space<vmem>>, vector<64x12xf32>
    tpu.vector_store %arg14[%c0_17, %c0_18], %22 {strides = array<i32>} : memref<64x12xf32, #tpu.memory_space<vmem>>, vector<64x12xf32>,
    %24 = arith.truncf %22 : vector<64x12xf32> to vector<64x12xbf16>
    %c0_19 = arith.constant 0 : index
    %c0_20 = arith.constant 0 : index
    %25 = vector.load %arg8[%c0_19, %c0_20] : memref<12x64xbf16, #tpu.memory_space<vmem>>, vector<12x64xbf16>
    %cst_21 = arith.constant dense<0.000000e+00> : vector<64x64xf32>
    %26 = tpu.matmul %24, %25, %cst_21 {dimension_numbers = #tpu.dot_dimension_numbers<[1], [0], [0], [1], [0, 0, 1, 1], [], []>} : vector<64x12xbf16>, vector<12x64xbf16>, vector<64x64xf32> -> vector<64x64xf32>
    %c0_22 = arith.constant 0 : index
    %c0_23 = arith.constant 0 : index
    %27 = vector.load %arg9[%c0_22, %c0_23] : memref<1x64xf32, #tpu.memory_space<vmem>>, vector<1x64xf32>
    %28 = vector.broadcast %27 : vector<1x64xf32> to vector<64x64xf32>
    %29 = arith.addf %26, %28 : vector<64x64xf32>
    %cst_24 = arith.constant 0.000000e+00 : f32
    %30 = vector.broadcast %cst_24 : f32 to vector<64x64xf32>
    %31 = arith.maximumf %29, %30 : vector<64x64xf32>
    %32 = arith.truncf %31 : vector<64x64xf32> to vector<64x64xbf16>
    %c0_25 = arith.constant 0 : index
    %c0_26 = arith.constant 0 : index
    %33 = vector.load %arg10[%c0_25, %c0_26] : memref<64x128xbf16, #tpu.memory_space<vmem>>, vector<64x128xbf16>
    %cst_27 = arith.constant dense<0.000000e+00> : vector<64x128xf32>
    %34 = tpu.matmul %32, %33, %cst_27 {dimension_numbers = #tpu.dot_dimension_numbers<[1], [0], [0], [1], [0, 0, 1, 1], [], []>} : vector<64x64xbf16>, vector<64x128xbf16>, vector<64x128xf32> -> vector<64x128xf32>
    %c0_28 = arith.constant 0 : index
    %c0_29 = arith.constant 0 : index
    %35 = vector.load %arg11[%c0_28, %c0_29] : memref<1x128xf32, #tpu.memory_space<vmem>>, vector<1x128xf32>
    %36 = vector.broadcast %35 : vector<1x128xf32> to vector<64x128xf32>
    %37 = arith.addf %34, %36 : vector<64x128xf32>
    %cst_30 = arith.constant 0.000000e+00 : f32
    %38 = vector.broadcast %cst_30 : f32 to vector<64x128xf32>
    %39 = arith.maximumf %37, %38 : vector<64x128xf32>
    %40 = arith.truncf %39 : vector<64x128xf32> to vector<64x128xbf16>
    %c0_31 = arith.constant 0 : index
    %c0_32 = arith.constant 0 : index
    %41 = vector.load %arg12[%c0_31, %c0_32] : memref<128x732xbf16, #tpu.memory_space<vmem>>, vector<128x732xbf16>
    %cst_33 = arith.constant dense<0.000000e+00> : vector<64x732xf32>
    %42 = tpu.matmul %40, %41, %cst_33 {dimension_numbers = #tpu.dot_dimension_numbers<[1], [0], [0], [1], [0, 0, 1, 1], [], []>} : vector<64x128xbf16>, vector<128x732xbf16>, vector<64x732xf32> -> vector<64x732xf32>
    %c0_34 = arith.constant 0 : index
    %c0_35 = arith.constant 0 : index
    %43 = vector.load %arg13[%c0_34, %c0_35] : memref<1x732xf32, #tpu.memory_space<vmem>>, vector<1x732xf32>
    %44 = vector.broadcast %43 : vector<1x732xf32> to vector<64x732xf32>
    %45 = arith.addf %42, %44 : vector<64x732xf32>
    %cst_36 = arith.constant 0.000000e+00 : f32
    %46 = vector.broadcast %cst_36 : f32 to vector<64x732xf32>
    %47 = arith.subf %46, %45 : vector<64x732xf32>
    %48 = math.exp %47 : vector<64x732xf32>
    %cst_37 = arith.constant 1.000000e+00 : f32
    %49 = vector.broadcast %cst_37 : f32 to vector<64x732xf32>
    %50 = arith.addf %49, %48 : vector<64x732xf32>
    %51 = tpu.reciprocal %50 {approx = true} : vector<64x732xf32> -> vector<64x732xf32>
    %52 = arith.truncf %51 : vector<64x732xf32> to vector<64x732xbf16>
    %c0_38 = arith.constant 0 : index
    %c0_39 = arith.constant 0 : index
    %53 = vector.load %arg15[%c0_38, %c0_39] : memref<64x732xbf16, #tpu.memory_space<vmem>>, vector<64x732xbf16>
    tpu.vector_store %arg15[%c0_38, %c0_39], %52 {strides = array<i32>} : memref<64x732xbf16, #tpu.memory_space<vmem>>, vector<64x732xbf16>,
    return
  }
  func.func @transform_0(%arg0: i32) -> (i32, i32) {
    %c0_i32 = arith.constant 0 : i32
    %c0_i32_0 = arith.constant 0 : i32
    return %arg0, %c0_i32 : i32, i32
  }
  func.func @transform_1(%arg0: i32) -> (i32, i32) {
    %c0_i32 = arith.constant 0 : i32
    %c0_i32_0 = arith.constant 0 : i32
    %c0_i32_1 = arith.constant 0 : i32
    return %c0_i32, %c0_i32_0 : i32, i32
  }
  func.func @transform_2(%arg0: i32) -> (i32, i32) {
    %c0_i32 = arith.constant 0 : i32
    %c0_i32_0 = arith.constant 0 : i32
    %c0_i32_1 = arith.constant 0 : i32
    return %c0_i32, %c0_i32_0 : i32, i32
  }
  func.func @transform_3(%arg0: i32) -> (i32, i32) {
    %c0_i32 = arith.constant 0 : i32
    %c0_i32_0 = arith.constant 0 : i32
    %c0_i32_1 = arith.constant 0 : i32
    return %c0_i32, %c0_i32_0 : i32, i32
  }
  func.func @transform_4(%arg0: i32) -> (i32, i32) {
    %c0_i32 = arith.constant 0 : i32
    %c0_i32_0 = arith.constant 0 : i32
    %c0_i32_1 = arith.constant 0 : i32
    return %c0_i32, %c0_i32_0 : i32, i32
  }
  func.func @transform_5(%arg0: i32) -> (i32, i32) {
    %c0_i32 = arith.constant 0 : i32
    %c0_i32_0 = arith.constant 0 : i32
    %c0_i32_1 = arith.constant 0 : i32
    return %c0_i32, %c0_i32_0 : i32, i32
  }
  func.func @transform_6(%arg0: i32) -> (i32, i32) {
    %c0_i32 = arith.constant 0 : i32
    %c0_i32_0 = arith.constant 0 : i32
    %c0_i32_1 = arith.constant 0 : i32
    return %c0_i32, %c0_i32_0 : i32, i32
  }
  func.func @transform_7(%arg0: i32) -> (i32, i32) {
    %c0_i32 = arith.constant 0 : i32
    %c0_i32_0 = arith.constant 0 : i32
    %c0_i32_1 = arith.constant 0 : i32
    return %c0_i32, %c0_i32_0 : i32, i32
  }
  func.func @transform_8(%arg0: i32) -> (i32, i32) {
    %c0_i32 = arith.constant 0 : i32
    %c0_i32_0 = arith.constant 0 : i32
    %c0_i32_1 = arith.constant 0 : i32
    return %c0_i32, %c0_i32_0 : i32, i32
  }
  func.func @transform_9(%arg0: i32) -> (i32, i32) {
    %c0_i32 = arith.constant 0 : i32
    %c0_i32_0 = arith.constant 0 : i32
    %c0_i32_1 = arith.constant 0 : i32
    return %c0_i32, %c0_i32_0 : i32, i32
  }
  func.func @transform_10(%arg0: i32) -> (i32, i32) {
    %c0_i32 = arith.constant 0 : i32
    %c0_i32_0 = arith.constant 0 : i32
    %c0_i32_1 = arith.constant 0 : i32
    return %c0_i32, %c0_i32_0 : i32, i32
  }
  func.func @transform_11(%arg0: i32) -> (i32, i32) {
    %c0_i32 = arith.constant 0 : i32
    %c0_i32_0 = arith.constant 0 : i32
    %c0_i32_1 = arith.constant 0 : i32
    return %c0_i32, %c0_i32_0 : i32, i32
  }
  func.func @transform_12(%arg0: i32) -> (i32, i32) {
    %c0_i32 = arith.constant 0 : i32
    %c0_i32_0 = arith.constant 0 : i32
    %c0_i32_1 = arith.constant 0 : i32
    return %c0_i32, %c0_i32_0 : i32, i32
  }
  func.func @transform_13(%arg0: i32) -> (i32, i32) {
    %c0_i32 = arith.constant 0 : i32
    %c0_i32_0 = arith.constant 0 : i32
    return %arg0, %c0_i32 : i32, i32
  }
  func.func @transform_14(%arg0: i32) -> (i32, i32) {
    %c0_i32 = arith.constant 0 : i32
    %c0_i32_0 = arith.constant 0 : i32
    return %arg0, %c0_i32 : i32, i32
  }
}

</mosaic_0001>

<llo_original>
// kernel: autoencoder_forward.1
$region0: #{autoencoder_forward.1}
  #allocation0 [shape = 'u32[]', space=smem, size = 0x4, offset = 0x4, fixed_abs, tag = 'smem constant byte address 0x4 - core index']
  #allocation1 [shape = 'u32[144,128]{1,0:T(1,128)}', space=vmem, size = 0x12000, scoped, tag = 'internal scratch']
  %s0 = inlined_call_operand.vmem [shape: f32[200,732], index: 0, kind: input, shape index: {}]
  %s1 = inlined_call_operand.vmem [shape: bf16[732,128], index: 1, kind: input, shape index: {}]
  %s2 = inlined_call_operand.vmem [shape: f32[1,128], index: 2, kind: input, shape index: {}]
  %s3 = inlined_call_operand.vmem [shape: bf16[128,64], index: 3, kind: input, shape index: {}]
  %s4 = inlined_call_operand.vmem [shape: f32[1,64], index: 4, kind: input, shape index: {}]
  %s5 = inlined_call_operand.vmem [shape: bf16[64,12], index: 5, kind: input, shape index: {}]
  %s6 = inlined_call_operand.vmem [shape: f32[1,12], index: 6, kind: input, shape index: {}]
  %s7 = inlined_call_operand.vmem [shape: bf16[12,64], index: 7, kind: input, shape index: {}]
  %s8 = inlined_call_operand.vmem [shape: f32[1,64], index: 8, kind: input, shape index: {}]
  %s9 = inlined_call_operand.vmem [shape: bf16[64,128], index: 9, kind: input, shape index: {}]
  %s10 = inlined_call_operand.vmem [shape: f32[1,128], index: 10, kind: input, shape index: {}]
  %s11 = inlined_call_operand.vmem [shape: bf16[128,732], index: 11, kind: input, shape index: {}]
  %s12 = inlined_call_operand.vmem [shape: f32[1,732], index: 12, kind: input, shape index: {}]
  %s13 = inlined_call_operand.vmem [shape: f32[200,12], index: 13, kind: output, shape index: {0}]
  %s14 = inlined_call_operand.hbm [shape: bf16[200,732], index: 14, kind: output, shape index: {1}]
  %15 = xla_tuple %s13, %s14
  %s16 = sld [smem:[#allocation0]]
  $region141: #{autoencoder_forward.1} parent=0
    _
  %s18 = ssub.s32 1, %s16
  %s19 = scalar_select 0, %s18, %s16
  $region1: #{autoencoder_forward.1} parent=0
    #allocation2 [shape = 'u8[65536]{0}', space=vmem, size = 0x10000, scoped, tag = 'output window, operand 0']
    #allocation3 [shape = 'u8[196608]{0}', space=vmem, size = 0x30000, scoped, tag = 'output window, operand 1']
    #allocation4 [shape = 's32[2]{0}', space=sflag, size = 0x8, scoped, tag = 'scoped memory for autoencoder_forward.1']
    %20 = vsyncpa [#allocation4], 0
    %s21 = scalar_lea.sflag [#allocation4], 1
    %22 = vsyncpa %s21, 0
    loop: start=0, step=1, limit=6
    $region2: #{autoencoder_forward.1} parent=1 // loop_pre_header
      _
    $region3: #{autoencoder_forward.1} parent=1 // loop_header
      %s24 = sphi 0, %s28
      %p25 = scmp.ge.s32.totalorder %s24, 6
      %s34 = sphi 0, %s36
      %s37 = sphi 0, %s34
      %s38 = sphi 0, %s37
      %s54 = sphi 0, %s38
      %s58 = sphi 0, %s58
      %s60 = sphi 0, %s58
      %s61 = sphi 0, %s60
      %s75 = sphi 0, %s61
      %s79 = sphi 0, %s79
      %s81 = sphi 0, %s79
      %s82 = sphi 0, %s81
      %s96 = sphi 0, %s82
      %s100 = sphi 0, %s100
      %s102 = sphi 0, %s100
      %s103 = sphi 0, %s102
      %s117 = sphi 0, %s103
      %s121 = sphi 0, %s121
      %s123 = sphi 0, %s121
      %s124 = sphi 0, %s123
      %s138 = sphi 0, %s124
      %s142 = sphi 0, %s142
      %s144 = sphi 0, %s142
      %s145 = sphi 0, %s144
      %s159 = sphi 0, %s145
      %s163 = sphi 0, %s163
      %s165 = sphi 0, %s163
      %s166 = sphi 0, %s165
      %s180 = sphi 0, %s166
      %s184 = sphi 0, %s184
      %s186 = sphi 0, %s184
      %s187 = sphi 0, %s186
      %s201 = sphi 0, %s187
      %s205 = sphi 0, %s205
      %s207 = sphi 0, %s205
      %s208 = sphi 0, %s207
      %s222 = sphi 0, %s208
      %s226 = sphi 0, %s226
      %s228 = sphi 0, %s226
      %s229 = sphi 0, %s228
      %s243 = sphi 0, %s229
      %s247 = sphi 0, %s247
      %s249 = sphi 0, %s247
      %s250 = sphi 0, %s249
      %s264 = sphi 0, %s250
      %s268 = sphi 0, %s268
      %s270 = sphi 0, %s268
      %s271 = sphi 0, %s270
      %s285 = sphi 0, %s271
      %s289 = sphi 0, %s289
      %s291 = sphi 0, %s289
      %s292 = sphi 0, %s291
      %s306 = sphi 0, %s292
      %s312 = sphi 0, %s314
      %s315 = sphi 0, %s312
      %s316 = sphi 0, %s315
      %s332 = sphi 0, %s316
      %s338 = sphi 0, %s340
      %s341 = sphi 0, %s338
      %s342 = sphi 0, %s341
      %s358 = sphi 0, %s342
    $region4: #{autoencoder_forward.1} parent=1 // loop_header_branch
      %27 = sbr.rel (%p25) target = $region8
    $region5: #{autoencoder_forward.1} parent=1 // loop_body
      %s29 = ssub.s32 %s24, 1
      %s30 = ssub.s32 %s24, 2
      %s31 = sadd.s32 %s24, 1
      %s32 = ssub.s32 %s24, %s31
      %p33 = scmp.eq.s32.totalorder %s32, 0
      %s35 = sadd.s32 %s34, 1
      %s36 = scalar_select %p33, %s34, %s35
      %p39 = pneg %p33
      %p40 = scmp.eq.s32.totalorder %s24, 3
      %p41 = por %p39, %p40
      %p42 = scmp.ne.s32.totalorder %s34, %s37
      %p43 = scmp.eq.s32.totalorder %s24, 0
      %p44 = por %p42, %p43
      %p45 = scmp.ne.s32.totalorder %s34, %s37
      %p46 = scmp.eq.s32.totalorder %s29, 3
      %p47 = por %p45, %p46
      %p48 = scmp.ne.s32.totalorder %s37, %s38
      %p49 = scmp.eq.s32.totalorder %s29, 0
      %p50 = por %p48, %p49
      %p51 = scmp.ne.s32.totalorder %s37, %s38
      %p52 = scmp.eq.s32.totalorder %s30, 3
      %p53 = por %p51, %p52
      %p55 = scmp.ne.s32.totalorder %s38, %s54
      %p56 = scmp.eq.s32.totalorder %s30, 0
      %p57 = por %p55, %p56
      %s59 = sadd.s32 %s58, 1
      %p62 = scmp.eq.s32.totalorder %s24, 3
      %p63 = scmp.ne.s32.totalorder %s58, %s60
      %p64 = scmp.eq.s32.totalorder %s24, 0
      %p65 = por %p63, %p64
      %p66 = scmp.ne.s32.totalorder %s58, %s60
      %p67 = scmp.eq.s32.totalorder %s29, 3
      %p68 = por %p66, %p67
      %p69 = scmp.ne.s32.totalorder %s60, %s61
      %p70 = scmp.eq.s32.totalorder %s29, 0
      %p71 = por %p69, %p70
      %p72 = scmp.ne.s32.totalorder %s60, %s61
      %p73 = scmp.eq.s32.totalorder %s30, 3
      %p74 = por %p72, %p73
      %p76 = scmp.ne.s32.totalorder %s61, %s75
      %p77 = scmp.eq.s32.totalorder %s30, 0
      %p78 = por %p76, %p77
      %s80 = sadd.s32 %s79, 1
      %p83 = scmp.eq.s32.totalorder %s24, 3
      %p84 = scmp.ne.s32.totalorder %s79, %s81
      %p85 = scmp.eq.s32.totalorder %s24, 0
      %p86 = por %p84, %p85
      %p87 = scmp.ne.s32.totalorder %s79, %s81
      %p88 = scmp.eq.s32.totalorder %s29, 3
      %p89 = por %p87, %p88
      %p90 = scmp.ne.s32.totalorder %s81, %s82
      %p91 = scmp.eq.s32.totalorder %s29, 0
      %p92 = por %p90, %p91
      %p93 = scmp.ne.s32.totalorder %s81, %s82
      %p94 = scmp.eq.s32.totalorder %s30, 3
      %p95 = por %p93, %p94
      %p97 = scmp.ne.s32.totalorder %s82, %s96
      %p98 = scmp.eq.s32.totalorder %s30, 0
      %p99 = por %p97, %p98
      %s101 = sadd.s32 %s100, 1
      %p104 = scmp.eq.s32.totalorder %s24, 3
      %p105 = scmp.ne.s32.totalorder %s100, %s102
      %p106 = scmp.eq.s32.totalorder %s24, 0
      %p107 = por %p105, %p106
      %p108 = scmp.ne.s32.totalorder %s100, %s102
      %p109 = scmp.eq.s32.totalorder %s29, 3
      %p110 = por %p108, %p109
      %p111 = scmp.ne.s32.totalorder %s102, %s103
      %p112 = scmp.eq.s32.totalorder %s29, 0
      %p113 = por %p111, %p112
      %p114 = scmp.ne.s32.totalorder %s102, %s103
      %p115 = scmp.eq.s32.totalorder %s30, 3
      %p116 = por %p114, %p115
      %p118 = scmp.ne.s32.totalorder %s103, %s117
      %p119 = scmp.eq.s32.totalorder %s30, 0
      %p120 = por %p118, %p119
      %s122 = sadd.s32 %s121, 1
      %p125 = scmp.eq.s32.totalorder %s24, 3
      %p126 = scmp.ne.s32.totalorder %s121, %s123
      %p127 = scmp.eq.s32.totalorder %s24, 0
      %p128 = por %p126, %p127
      %p129 = scmp.ne.s32.totalorder %s121, %s123
      %p130 = scmp.eq.s32.totalorder %s29, 3
      %p131 = por %p129, %p130
      %p132 = scmp.ne.s32.totalorder %s123, %s124
      %p133 = scmp.eq.s32.totalorder %s29, 0
      %p134 = por %p132, %p133
      %p135 = scmp.ne.s32.totalorder %s123, %s124
      %p136 = scmp.eq.s32.totalorder %s30, 3
      %p137 = por %p135, %p136
      %p139 = scmp.ne.s32.totalorder %s124, %s138
      %p140 = scmp.eq.s32.totalorder %s30, 0
      %p141 = por %p139, %p140
      %s143 = sadd.s32 %s142, 1
      %p146 = scmp.eq.s32.totalorder %s24, 3
      %p147 = scmp.ne.s32.totalorder %s142, %s144
      %p148 = scmp.eq.s32.totalorder %s24, 0
      %p149 = por %p147, %p148
      %p150 = scmp.ne.s32.totalorder %s142, %s144
      %p151 = scmp.eq.s32.totalorder %s29, 3
      %p152 = por %p150, %p151
      %p153 = scmp.ne.s32.totalorder %s144, %s145
      %p154 = scmp.eq.s32.totalorder %s29, 0
      %p155 = por %p153, %p154
      %p156 = scmp.ne.s32.totalorder %s144, %s145
      %p157 = scmp.eq.s32.totalorder %s30, 3
      %p158 = por %p156, %p157
      %p160 = scmp.ne.s32.totalorder %s145, %s159
      %p161 = scmp.eq.s32.totalorder %s30, 0
      %p162 = por %p160, %p161
      %s164 = sadd.s32 %s163, 1
      %p167 = scmp.eq.s32.totalorder %s24, 3
      %p168 = scmp.ne.s32.totalorder %s163, %s165
      %p169 = scmp.eq.s32.totalorder %s24, 0
      %p170 = por %p168, %p169
      %p171 = scmp.ne.s32.totalorder %s163, %s165
      %p172 = scmp.eq.s32.totalorder %s29, 3
      %p173 = por %p171, %p172
      %p174 = scmp.ne.s32.totalorder %s165, %s166
      %p175 = scmp.eq.s32.totalorder %s29, 0
      %p176 = por %p174, %p175
      %p177 = scmp.ne.s32.totalorder %s165, %s166
      %p178 = scmp.eq.s32.totalorder %s30, 3
      %p179 = por %p177, %p178
      %p181 = scmp.ne.s32.totalorder %s166, %s180
      %p182 = scmp.eq.s32.totalorder %s30, 0
      %p183 = por %p181, %p182
      %s185 = sadd.s32 %s184, 1
      %p188 = scmp.eq.s32.totalorder %s24, 3
      %p189 = scmp.ne.s32.totalorder %s184, %s186
      %p190 = scmp.eq.s32.totalorder %s24, 0
      %p191 = por %p189, %p190
      %p192 = scmp.ne.s32.totalorder %s184, %s186
      %p193 = scmp.eq.s32.totalorder %s29, 3
      %p194 = por %p192, %p193
      %p195 = scmp.ne.s32.totalorder %s186, %s187
      %p196 = scmp.eq.s32.totalorder %s29, 0
      %p197 = por %p195, %p196
      %p198 = scmp.ne.s32.totalorder %s186, %s187
      %p199 = scmp.eq.s32.totalorder %s30, 3
      %p200 = por %p198, %p199
      %p202 = scmp.ne.s32.totalorder %s187, %s201
      %p203 = scmp.eq.s32.totalorder %s30, 0
      %p204 = por %p202, %p203
      %s206 = sadd.s32 %s205, 1
      %p209 = scmp.eq.s32.totalorder %s24, 3
      %p210 = scmp.ne.s32.totalorder %s205, %s207
      %p211 = scmp.eq.s32.totalorder %s24, 0
      %p212 = por %p210, %p211
      %p213 = scmp.ne.s32.totalorder %s205, %s207
      %p214 = scmp.eq.s32.totalorder %s29, 3
      %p215 = por %p213, %p214
      %p216 = scmp.ne.s32.totalorder %s207, %s208
      %p217 = scmp.eq.s32.totalorder %s29, 0
      %p218 = por %p216, %p217
      %p219 = scmp.ne.s32.totalorder %s207, %s208
      %p220 = scmp.eq.s32.totalorder %s30, 3
      %p221 = por %p219, %p220
      %p223 = scmp.ne.s32.totalorder %s208, %s222
      %p224 = scmp.eq.s32.totalorder %s30, 0
      %p225 = por %p223, %p224
      %s227 = sadd.s32 %s226, 1
      %p230 = scmp.eq.s32.totalorder %s24, 3
      %p231 = scmp.ne.s32.totalorder %s226, %s228
      %p232 = scmp.eq.s32.totalorder %s24, 0
      %p233 = por %p231, %p232
      %p234 = scmp.ne.s32.totalorder %s226, %s228
      %p235 = scmp.eq.s32.totalorder %s29, 3
      %p236 = por %p234, %p235
      %p237 = scmp.ne.s32.totalorder %s228, %s229
      %p238 = scmp.eq.s32.totalorder %s29, 0
      %p239 = por %p237, %p238
      %p240 = scmp.ne.s32.totalorder %s228, %s229
      %p241 = scmp.eq.s32.totalorder %s30, 3
      %p242 = por %p240, %p241
      %p244 = scmp.ne.s32.totalorder %s229, %s243
      %p245 = scmp.eq.s32.totalorder %s30, 0
      %p246 = por %p244, %p245
      %s248 = sadd.s32 %s247, 1
      %p251 = scmp.eq.s32.totalorder %s24, 3
      %p252 = scmp.ne.s32.totalorder %s247, %s249
      %p253 = scmp.eq.s32.totalorder %s24, 0
      %p254 = por %p252, %p253
      %p255 = scmp.ne.s32.totalorder %s247, %s249
      %p256 = scmp.eq.s32.totalorder %s29, 3
      %p257 = por %p255, %p256
      %p258 = scmp.ne.s32.totalorder %s249, %s250
      %p259 = scmp.eq.s32.totalorder %s29, 0
      %p260 = por %p258, %p259
      %p261 = scmp.ne.s32.totalorder %s249, %s250
      %p262 = scmp.eq.s32.totalorder %s30, 3
      %p263 = por %p261, %p262
      %p265 = scmp.ne.s32.totalorder %s250, %s264
      %p266 = scmp.eq.s32.totalorder %s30, 0
      %p267 = por %p265, %p266
      %s269 = sadd.s32 %s268, 1
      %p272 = scmp.eq.s32.totalorder %s24, 3
      %p273 = scmp.ne.s32.totalorder %s268, %s270
      %p274 = scmp.eq.s32.totalorder %s24, 0
      %p275 = por %p273, %p274
      %p276 = scmp.ne.s32.totalorder %s268, %s270
      %p277 = scmp.eq.s32.totalorder %s29, 3
      %p278 = por %p276, %p277
      %p279 = scmp.ne.s32.totalorder %s270, %s271
      %p280 = scmp.eq.s32.totalorder %s29, 0
      %p281 = por %p279, %p280
      %p282 = scmp.ne.s32.totalorder %s270, %s271
      %p283 = scmp.eq.s32.totalorder %s30, 3
      %p284 = por %p282, %p283
      %p286 = scmp.ne.s32.totalorder %s271, %s285
      %p287 = scmp.eq.s32.totalorder %s30, 0
      %p288 = por %p286, %p287
      %s290 = sadd.s32 %s289, 1
      %p293 = scmp.eq.s32.totalorder %s24, 3
      %p294 = scmp.ne.s32.totalorder %s289, %s291
      %p295 = scmp.eq.s32.totalorder %s24, 0
      %p296 = por %p294, %p295
      %p297 = scmp.ne.s32.totalorder %s289, %s291
      %p298 = scmp.eq.s32.totalorder %s29, 3
      %p299 = por %p297, %p298
      %p300 = scmp.ne.s32.totalorder %s291, %s292
      %p301 = scmp.eq.s32.totalorder %s29, 0
      %p302 = por %p300, %p301
      %p303 = scmp.ne.s32.totalorder %s291, %s292
      %p304 = scmp.eq.s32.totalorder %s30, 3
      %p305 = por %p303, %p304
      %p307 = scmp.ne.s32.totalorder %s292, %s306
      %p308 = scmp.eq.s32.totalorder %s30, 0
      %p309 = por %p307, %p308
      %s310 = ssub.s32 %s24, %s31
      %p311 = scmp.eq.s32.totalorder %s310, 0
      %s313 = sadd.s32 %s312, 1
      %s314 = scalar_select %p311, %s312, %s313
      %p317 = pneg %p311
      %p318 = scmp.eq.s32.totalorder %s24, 3
      %p319 = por %p317, %p318
      %p320 = scmp.ne.s32.totalorder %s312, %s315
      %p321 = scmp.eq.s32.totalorder %s24, 0
      %p322 = por %p320, %p321
      %p323 = scmp.ne.s32.totalorder %s312, %s315
      %p324 = scmp.eq.s32.totalorder %s29, 3
      %p325 = por %p323, %p324
      %p326 = scmp.ne.s32.totalorder %s315, %s316
      %p327 = scmp.eq.s32.totalorder %s29, 0
      %p328 = por %p326, %p327
      %p329 = scmp.ne.s32.totalorder %s315, %s316
      %p330 = scmp.eq.s32.totalorder %s30, 3
      %p331 = por %p329, %p330
      %p333 = scmp.ne.s32.totalorder %s316, %s332
      %p334 = scmp.eq.s32.totalorder %s30, 0
      %p335 = por %p333, %p334
      %s336 = ssub.s32 %s24, %s31
      %p337 = scmp.eq.s32.totalorder %s336, 0
      %s339 = sadd.s32 %s338, 1
      %s340 = scalar_select %p337, %s338, %s339
      %p343 = pneg %p337
      %p344 = scmp.eq.s32.totalorder %s24, 3
      %p345 = por %p343, %p344
      %p346 = scmp.ne.s32.totalorder %s338, %s341
      %p347 = scmp.eq.s32.totalorder %s24, 0
      %p348 = por %p346, %p347
      %p349 = scmp.ne.s32.totalorder %s338, %s341
      %p350 = scmp.eq.s32.totalorder %s29, 3
      %p351 = por %p349, %p350
      %p352 = scmp.ne.s32.totalorder %s341, %s342
      %p353 = scmp.eq.s32.totalorder %s29, 0
      %p354 = por %p352, %p353
      %p355 = scmp.ne.s32.totalorder %s341, %s342
      %p356 = scmp.eq.s32.totalorder %s30, 3
      %p357 = por %p355, %p356
      %p359 = scmp.ne.s32.totalorder %s342, %s358
      %p360 = scmp.eq.s32.totalorder %s30, 0
      %p361 = por %p359, %p360
      %p362 = scmp.le.s32.totalorder 1, %s24
      %p363 = scmp.lt.s32.totalorder %s24, 5
      %p364 = pnand %p362, %p363
      %p365 = pneg %p364
      // Predicated region
      $region9: #{autoencoder_forward.1} parent=5 // pred_check
        _
      $region10: #{autoencoder_forward.1} parent=5 // pred_check_branch
        %367 = sbr.rel (%p364) target = $region12
      $region11: #{autoencoder_forward.1} parent=5 // pred_region
        %s368 = ssub.s32 %s24, 1
        // Predicated region
        $region13: #{autoencoder_forward.1} parent=11 // pred_check
          %p369 = pneg %p71
        $region14: #{autoencoder_forward.1} parent=11 // pred_check_branch
          %371 = sbr.rel (%p369) target = $region16
        $region15: #{autoencoder_forward.1} parent=11 // pred_region
          _
        $region16: #{autoencoder_forward.1} parent=11 // pred_fallthru
          _
        // Predicated region
        $region17: #{autoencoder_forward.1} parent=11 // pred_check
          %p372 = pneg %p92
        $region18: #{autoencoder_forward.1} parent=11 // pred_check_branch
          %374 = sbr.rel (%p372) target = $region20
        $region19: #{autoencoder_forward.1} parent=11 // pred_region
          _
        $region20: #{autoencoder_forward.1} parent=11 // pred_fallthru
          _
        // Predicated region
        $region21: #{autoencoder_forward.1} parent=11 // pred_check
          %p375 = pneg %p113
        $region22: #{autoencoder_forward.1} parent=11 // pred_check_branch
          %377 = sbr.rel (%p375) target = $region24
        $region23: #{autoencoder_forward.1} parent=11 // pred_region
          _
        $region24: #{autoencoder_forward.1} parent=11 // pred_fallthru
          _
        // Predicated region
        $region25: #{autoencoder_forward.1} parent=11 // pred_check
          %p378 = pneg %p134
        $region26: #{autoencoder_forward.1} parent=11 // pred_check_branch
          %380 = sbr.rel (%p378) target = $region28
        $region27: #{autoencoder_forward.1} parent=11 // pred_region
          _
        $region28: #{autoencoder_forward.1} parent=11 // pred_fallthru
          _
        // Predicated region
        $region29: #{autoencoder_forward.1} parent=11 // pred_check
          %p381 = pneg %p155
        $region30: #{autoencoder_forward.1} parent=11 // pred_check_branch
          %383 = sbr.rel (%p381) target = $region32
        $region31: #{autoencoder_forward.1} parent=11 // pred_region
          _
        $region32: #{autoencoder_forward.1} parent=11 // pred_fallthru
          _
        // Predicated region
        $region33: #{autoencoder_forward.1} parent=11 // pred_check
          %p384 = pneg %p176
        $region34: #{autoencoder_forward.1} parent=11 // pred_check_branch
          %386 = sbr.rel (%p384) target = $region36
        $region35: #{autoencoder_forward.1} parent=11 // pred_region
          _
        $region36: #{autoencoder_forward.1} parent=11 // pred_fallthru
          _
        // Predicated region
        $region37: #{autoencoder_forward.1} parent=11 // pred_check
          %p387 = pneg %p197
        $region38: #{autoencoder_forward.1} parent=11 // pred_check_branch
          %389 = sbr.rel (%p387) target = $region40
        $region39: #{autoencoder_forward.1} parent=11 // pred_region
          _
        $region40: #{autoencoder_forward.1} parent=11 // pred_fallthru
          _
        // Predicated region
        $region41: #{autoencoder_forward.1} parent=11 // pred_check
          %p390 = pneg %p218
        $region42: #{autoencoder_forward.1} parent=11 // pred_check_branch
          %392 = sbr.rel (%p390) target = $region44
        $region43: #{autoencoder_forward.1} parent=11 // pred_region
          _
        $region44: #{autoencoder_forward.1} parent=11 // pred_fallthru
          _
        // Predicated region
        $region45: #{autoencoder_forward.1} parent=11 // pred_check
          %p393 = pneg %p239
        $region46: #{autoencoder_forward.1} parent=11 // pred_check_branch
          %395 = sbr.rel (%p393) target = $region48
        $region47: #{autoencoder_forward.1} parent=11 // pred_region
          _
        $region48: #{autoencoder_forward.1} parent=11 // pred_fallthru
          _
        // Predicated region
        $region49: #{autoencoder_forward.1} parent=11 // pred_check
          %p396 = pneg %p260
        $region50: #{autoencoder_forward.1} parent=11 // pred_check_branch
          %398 = sbr.rel (%p396) target = $region52
        $region51: #{autoencoder_forward.1} parent=11 // pred_region
          _
        $region52: #{autoencoder_forward.1} parent=11 // pred_fallthru
          _
        // Predicated region
        $region53: #{autoencoder_forward.1} parent=11 // pred_check
          %p399 = pneg %p281
        $region54: #{autoencoder_forward.1} parent=11 // pred_check_branch
          %401 = sbr.rel (%p399) target = $region56
        $region55: #{autoencoder_forward.1} parent=11 // pred_region
          _
        $region56: #{autoencoder_forward.1} parent=11 // pred_fallthru
          _
        // Predicated region
        $region57: #{autoencoder_forward.1} parent=11 // pred_check
          %p402 = pneg %p302
        $region58: #{autoencoder_forward.1} parent=11 // pred_check_branch
          %404 = sbr.rel (%p402) target = $region60
        $region59: #{autoencoder_forward.1} parent=11 // pred_region
          _
        $region60: #{autoencoder_forward.1} parent=11 // pred_fallthru
          _
      $region12: #{autoencoder_forward.1} parent=5 // pred_fallthru
        _
      %p405 = scmp.lt.s32.totalorder %s24, 4
      // Predicated region
      $region61: #{autoencoder_forward.1} parent=5 // pred_check
        %p406 = pneg %p405
      $region62: #{autoencoder_forward.1} parent=5 // pred_check_branch
        %408 = sbr.rel (%p406) target = $region64
      $region63: #{autoencoder_forward.1} parent=5 // pred_region
        // Predicated region
        $region65: #{autoencoder_forward.1} parent=63 // pred_check
          %p409 = pneg %p44
        $region66: #{autoencoder_forward.1} parent=63 // pred_check_branch
          %411 = sbr.rel (%p409) target = $region68
        $region67: #{autoencoder_forward.1} parent=63 // pred_region
          %s412 = smul.u32 8, %s24
          %s413 = ssub.s32 25, %s412
          %p414 = scmp.lt.s32.totalorder %s413, 8
          %s415 = scalar_select %p414, %s413, 8
          %s416 = smul.u32 128, %s415
          %s417 = smul.u32 %s416, 6
          %p418 = scmp.lt.s32.totalorder %s412, 24
          %s419 = scalar_select %p418, %s412, 24
          %s420 = smul.addr %s419, 6
          %s421 = smul.addr %s420, 8
          %s422 = scalar_lea.vmem %s0, %s421
          %s423 = smul.u32 8, %s24
          %s424 = ssub.s32 25, %s423
          %p425 = scmp.lt.s32.totalorder %s424, 8
          %s426 = scalar_select %p425, %s424, 8
          %s427 = smul.u32 128, %s426
          %s428 = smul.u32 %s427, 6
        $region68: #{autoencoder_forward.1} parent=63 // pred_fallthru
          _
      $region64: #{autoencoder_forward.1} parent=5 // pred_fallthru
        _
      %p429 = scmp.le.s32.totalorder 1, %s24
      %p430 = scmp.lt.s32.totalorder %s24, 5
      %p431 = pnand %p429, %p430
      %p432 = pneg %p431
      // Predicated region
      $region69: #{autoencoder_forward.1} parent=5 // pred_check
        _
      $region70: #{autoencoder_forward.1} parent=5 // pred_check_branch
        %434 = sbr.rel (%p431) target = $region72
      $region71: #{autoencoder_forward.1} parent=5 // pred_region
        %s435 = ssub.s32 %s24, 1
        %s436 = smul.u32 8, %s29
        %s437 = ssub.s32 25, %s436
        %p438 = scmp.lt.s32.totalorder %s437, 8
        %s439 = scalar_select %p438, %s437, 8
        %s440 = smul.u32 128, %s439
        %s441 = smul.u32 %s440, 6
        %p442 = scmp.lt.s32.totalorder %s436, 24
        %s443 = scalar_select %p442, %s436, 24
        %s444 = smul.addr %s443, 6
        %s445 = smul.addr %s444, 8
        %s446 = scalar_lea.vmem %s0, %s445
        %p447 = pneg %p50
        %p448 = pneg %p47
        %p449 = pneg %p71
        %p450 = pneg %p68
        %p451 = pneg %p92
        %p452 = pneg %p89
        %p453 = pneg %p113
        %p454 = pneg %p110
        %p455 = pneg %p134
        %p456 = pneg %p131
        %p457 = pneg %p155
        %p458 = pneg %p152
        %p459 = pneg %p176
        %p460 = pneg %p173
        %p461 = pneg %p197
        %p462 = pneg %p194
        %p463 = pneg %p218
        %p464 = pneg %p215
        %p465 = pneg %p239
        %p466 = pneg %p236
        %p467 = pneg %p260
        %p468 = pneg %p257
        %p469 = pneg %p281
        %p470 = pneg %p278
        %p471 = pneg %p302
        %p472 = pneg %p299
        %p473 = pneg %p328
        %p474 = pneg %p325
        %s475 = sand.u32 %s315, 1
        %s476 = sand.u32 %s315, 1
        %s477 = smul.addr %s476, 64
        %s478 = scalar_lea.vmem [#allocation2], %s477
        %p479 = pneg %p354
        %p480 = pneg %p351
        %s481 = sand.u32 %s341, 1
        %s482 = scalar_lea.sflag [#allocation4], %s481
        %s483 = sand.u32 %s341, 1
        %s484 = smul.addr %s483, 192
        %s485 = scalar_lea.vmem [#allocation3], %s484
        %s486 = smul.u32 8, %s29
        %s487 = ssub.s32 25, %s486
        %p488 = scmp.lt.s32.totalorder %s487, 8
        %s489 = scalar_select %p488, %s487, 8
        %s490 = smul.u32 128, %s489
        %s491 = smul.u32 %s490, 6
        %p492 = scmp.lt.s32.totalorder %s486, 24
        %s493 = scalar_select %p492, %s486, 24
        %s494 = smul.addr %s493, 6
        %s495 = smul.addr %s494, 8
        %s496 = scalar_lea.vmem %s0, %s495
        %s497 = smul.u32 8, %s29
        %s498 = ssub.s32 25, %s497
        %p499 = scmp.lt.s32.totalorder %s498, 8
        %s500 = scalar_select %p499, %s498, 8
        %s501 = smul.u32 128, %s500
        %s502 = smul.u32 %s501, 6
        %s503 = smul.u32 8, %s29
        %s504 = ssub.s32 25, %s503
        %p505 = scmp.lt.s32.totalorder %s504, 8
        %s506 = scalar_select %p505, %s504, 8
        %s507 = smul.u32 128, %s506
        %s508 = smul.u32 8, %s29
        %s509 = ssub.s32 25, %s508
        %p510 = scmp.lt.s32.totalorder %s509, 8
        %s511 = scalar_select %p510, %s509, 8
        %s512 = smul.u32 64, %s511
        %s513 = smul.u32 %s512, 6
        %v515 = vld [vmem:[%s496] sm:$0xff]
        %v516 = vld [vmem:[%s496 + $0x8] sm:$0xff]
        %v517 = vld [vmem:[%s496 + $0x10] sm:$0xff]
        %v518 = vld [vmem:[%s496 + $0x18] sm:$0xff]
        %v519 = vld [vmem:[%s496 + $0x20] sm:$0xff]
        %v520 = vld [vmem:[%s496 + $0x28] sm:$0xff]
        %v521 = vld [vmem:[%s496 + $0x30] sm:$0xff]
        %v522 = vld [vmem:[%s496 + $0x38] sm:$0xff]
        %v523 = vld [vmem:[%s496 + $0x40] sm:$0xff]
        %v524 = vld [vmem:[%s496 + $0x48] sm:$0xff]
        %v525 = vld [vmem:[%s496 + $0x50] sm:$0xff]
        %v526 = vld [vmem:[%s496 + $0x58] sm:$0xff]
        %v527 = vld [vmem:[%s496 + $0x60] sm:$0xff]
        %v528 = vld [vmem:[%s496 + $0x68] sm:$0xff]
        %v529 = vld [vmem:[%s496 + $0x70] sm:$0xff]
        %v530 = vld [vmem:[%s496 + $0x78] sm:$0xff]
        %v531 = vld [vmem:[%s496 + $0x80] sm:$0xff]
        %v532 = vld [vmem:[%s496 + $0x88] sm:$0xff]
        %v533 = vld [vmem:[%s496 + $0x90] sm:$0xff]
        %v534 = vld [vmem:[%s496 + $0x98] sm:$0xff]
        %v535 = vld [vmem:[%s496 + $0xa0] sm:$0xff]
        %v536 = vld [vmem:[%s496 + $0xa8] sm:$0xff]
        %v537 = vld [vmem:[%s496 + $0xb0] sm:$0xff]
        %v538 = vld [vmem:[%s496 + $0xb8] sm:$0xff]
        %v539 = vld [vmem:[%s496 + $0xc0] sm:$0xff]
        %v540 = vld [vmem:[%s496 + $0xc8] sm:$0xff]
        %v541 = vld [vmem:[%s496 + $0xd0] sm:$0xff]
        %v542 = vld [vmem:[%s496 + $0xd8] sm:$0xff]
        %v543 = vld [vmem:[%s496 + $0xe0] sm:$0xff]
        %v544 = vld [vmem:[%s496 + $0xe8] sm:$0xff]
        %v545 = vld [vmem:[%s496 + $0xf0] sm:$0xff]
        %v546 = vld [vmem:[%s496 + $0xf8] sm:$0xff]
        %v547 = vld [vmem:[%s496 + $0x100] sm:$0xff]
        %v548 = vld [vmem:[%s496 + $0x108] sm:$0xff]
        %v549 = vld [vmem:[%s496 + $0x110] sm:$0xff]
        %v550 = vld [vmem:[%s496 + $0x118] sm:$0xff]
        %v551 = vld [vmem:[%s496 + $0x120] sm:$0xff]
        %v552 = vld [vmem:[%s496 + $0x128] sm:$0xff]
        %v553 = vld [vmem:[%s496 + $0x130] sm:$0xff]
        %v554 = vld [vmem:[%s496 + $0x138] sm:$0xff]
        %v555 = vld [vmem:[%s496 + $0x140] sm:$0xff]
        %v556 = vld [vmem:[%s496 + $0x148] sm:$0xff]
        %v557 = vld [vmem:[%s496 + $0x150] sm:$0xff]
        %v558 = vld [vmem:[%s496 + $0x158] sm:$0xff]
        %v559 = vld [vmem:[%s496 + $0x160] sm:$0xff]
        %v560 = vld [vmem:[%s496 + $0x168] sm:$0xff]
        %v561 = vld [vmem:[%s496 + $0x170] sm:$0xff]
        %v562 = vld [vmem:[%s496 + $0x178] sm:$0xff]
        %v563 = vpack.c.bf16 %v521, %v515
        %v564 = vpack.c.bf16 %v522, %v516
        %v565 = vpack.c.bf16 %v523, %v517
        %v566 = vpack.c.bf16 %v524, %v518
        %v567 = vpack.c.bf16 %v525, %v519
        %v568 = vpack.c.bf16 %v526, %v520
        %v569 = vpack.c.bf16 %v533, %v527
        %v570 = vpack.c.bf16 %v534, %v528
        %v571 = vpack.c.bf16 %v535, %v529
        %v572 = vpack.c.bf16 %v536, %v530
        %v573 = vpack.c.bf16 %v537, %v531
        %v574 = vpack.c.bf16 %v538, %v532
        %v575 = vpack.c.bf16 %v545, %v539
        %v576 = vpack.c.bf16 %v546, %v540
        %v577 = vpack.c.bf16 %v547, %v541
        %v578 = vpack.c.bf16 %v548, %v542
        %v579 = vpack.c.bf16 %v549, %v543
        %v580 = vpack.c.bf16 %v550, %v544
        %v581 = vpack.c.bf16 %v557, %v551
        %v582 = vpack.c.bf16 %v558, %v552
        %v583 = vpack.c.bf16 %v559, %v553
        %v584 = vpack.c.bf16 %v560, %v554
        %v585 = vpack.c.bf16 %v561, %v555
        %v586 = vpack.c.bf16 %v562, %v556
        %v587 = vld [vmem:[%s1] sm:$0xf]
        %v588 = vld [vmem:[%s1 + $0x4] sm:$0xf]
        %v589 = vld [vmem:[%s1 + $0x8] sm:$0xf]
        %v590 = vld [vmem:[%s1 + $0xc] sm:$0xf]
        %v591 = vld [vmem:[%s1 + $0x10] sm:$0xf]
        %v592 = vld [vmem:[%s1 + $0x14] sm:$0xf]
        %v593 = vld [vmem:[%s1 + $0x18] sm:$0xf]
        %v594 = vld [vmem:[%s1 + $0x1c] sm:$0xf]
        %v595 = vld [vmem:[%s1 + $0x20] sm:$0xf]
        %v596 = vld [vmem:[%s1 + $0x24] sm:$0xf]
        %v597 = vld [vmem:[%s1 + $0x28] sm:$0xf]
        %v598 = vld [vmem:[%s1 + $0x2c] sm:$0xf]
        %v599 = vld [vmem:[%s1 + $0x30] sm:$0xf]
        %v600 = vld [vmem:[%s1 + $0x34] sm:$0xf]
        %v601 = vld [vmem:[%s1 + $0x38] sm:$0xf]
        %v602 = vld [vmem:[%s1 + $0x3c] sm:$0xf]
        %v603 = vld [vmem:[%s1 + $0x40] sm:$0xf]
        %v604 = vld [vmem:[%s1 + $0x44] sm:$0xf]
        %v605 = vld [vmem:[%s1 + $0x48] sm:$0xf]
        %v606 = vld [vmem:[%s1 + $0x4c] sm:$0xf]
        %v607 = vld [vmem:[%s1 + $0x50] sm:$0xf]
        %v608 = vld [vmem:[%s1 + $0x54] sm:$0xf]
        %v609 = vld [vmem:[%s1 + $0x58] sm:$0xf]
        %v610 = vld [vmem:[%s1 + $0x5c] sm:$0xf]
        %v611 = vld [vmem:[%s1 + $0x60] sm:$0xf]
        %v612 = vld [vmem:[%s1 + $0x64] sm:$0xf]
        %v613 = vld [vmem:[%s1 + $0x68] sm:$0xf]
        %v614 = vld [vmem:[%s1 + $0x6c] sm:$0xf]
        %v615 = vld [vmem:[%s1 + $0x70] sm:$0xf]
        %v616 = vld [vmem:[%s1 + $0x74] sm:$0xf]
        %v617 = vld [vmem:[%s1 + $0x78] sm:$0xf]
        %v618 = vld [vmem:[%s1 + $0x7c] sm:$0xf]
        %v619 = vld [vmem:[%s1 + $0x80] sm:$0xf]
        %v620 = vld [vmem:[%s1 + $0x84] sm:$0xf]
        %v621 = vld [vmem:[%s1 + $0x88] sm:$0xf]
        %v622 = vld [vmem:[%s1 + $0x8c] sm:$0xf]
        %v623 = vld [vmem:[%s1 + $0x90] sm:$0xf]
        %v624 = vld [vmem:[%s1 + $0x94] sm:$0xf]
        %v625 = vld [vmem:[%s1 + $0x98] sm:$0xf]
        %v626 = vld [vmem:[%s1 + $0x9c] sm:$0xf]
        %v627 = vld [vmem:[%s1 + $0xa0] sm:$0xf]
        %v628 = vld [vmem:[%s1 + $0xa4] sm:$0xf]
        %v629 = vld [vmem:[%s1 + $0xa8] sm:$0xf]
        %v630 = vld [vmem:[%s1 + $0xac] sm:$0xf]
        %v631 = vld [vmem:[%s1 + $0xb0] sm:$0xf]
        %v632 = vld [vmem:[%s1 + $0xb4] sm:$0xf]
        %v633 = vld [vmem:[%s1 + $0xb8] sm:$0xf]
        %v634 = vld [vmem:[%s1 + $0xbc] sm:$0xf]
        %v635 = vld [vmem:[%s1 + $0xc0] sm:$0xf]
        %v636 = vld [vmem:[%s1 + $0xc4] sm:$0xf]
        %v637 = vld [vmem:[%s1 + $0xc8] sm:$0xf]
        %v638 = vld [vmem:[%s1 + $0xcc] sm:$0xf]
        %v639 = vld [vmem:[%s1 + $0xd0] sm:$0xf]
        %v640 = vld [vmem:[%s1 + $0xd4] sm:$0xf]
        %v641 = vld [vmem:[%s1 + $0xd8] sm:$0xf]
        %v642 = vld [vmem:[%s1 + $0xdc] sm:$0xf]
        %v643 = vld [vmem:[%s1 + $0xe0] sm:$0xf]
        %v644 = vld [vmem:[%s1 + $0xe4] sm:$0xf]
        %v645 = vld [vmem:[%s1 + $0xe8] sm:$0xf]
        %v646 = vld [vmem:[%s1 + $0xec] sm:$0xf]
        %v647 = vld [vmem:[%s1 + $0xf0] sm:$0xf]
        %v648 = vld [vmem:[%s1 + $0xf4] sm:$0xf]
        %v649 = vld [vmem:[%s1 + $0xf8] sm:$0xf]
        %v650 = vld [vmem:[%s1 + $0xfc] sm:$0xf]
        %v651 = vld [vmem:[%s1 + $0x100] sm:$0xf]
        %v652 = vld [vmem:[%s1 + $0x104] sm:$0xf]
        %v653 = vld [vmem:[%s1 + $0x108] sm:$0xf]
        %v654 = vld [vmem:[%s1 + $0x10c] sm:$0xf]
        %v655 = vld [vmem:[%s1 + $0x110] sm:$0xf]
        %v656 = vld [vmem:[%s1 + $0x114] sm:$0xf]
        %v657 = vld [vmem:[%s1 + $0x118] sm:$0xf]
        %v658 = vld [vmem:[%s1 + $0x11c] sm:$0xf]
        %v659 = vld [vmem:[%s1 + $0x120] sm:$0xf]
        %v660 = vld [vmem:[%s1 + $0x124] sm:$0xf]
        %v661 = vld [vmem:[%s1 + $0x128] sm:$0xf]
        %v662 = vld [vmem:[%s1 + $0x12c] sm:$0xf]
        %v663 = vld [vmem:[%s1 + $0x130] sm:$0xf]
        %v664 = vld [vmem:[%s1 + $0x134] sm:$0xf]
        %v665 = vld [vmem:[%s1 + $0x138] sm:$0xf]
        %v666 = vld [vmem:[%s1 + $0x13c] sm:$0xf]
        %v667 = vld [vmem:[%s1 + $0x140] sm:$0xf]
        %v668 = vld [vmem:[%s1 + $0x144] sm:$0xf]
        %v669 = vld [vmem:[%s1 + $0x148] sm:$0xf]
        %v670 = vld [vmem:[%s1 + $0x14c] sm:$0xf]
        %v671 = vld [vmem:[%s1 + $0x150] sm:$0xf]
        %v672 = vld [vmem:[%s1 + $0x154] sm:$0xf]
        %v673 = vld [vmem:[%s1 + $0x158] sm:$0xf]
        %v674 = vld [vmem:[%s1 + $0x15c] sm:$0xf]
        %v675 = vld [vmem:[%s1 + $0x160] sm:$0xf]
        %v676 = vld [vmem:[%s1 + $0x164] sm:$0xf]
        %v677 = vld [vmem:[%s1 + $0x168] sm:$0xf]
        %v678 = vld [vmem:[%s1 + $0x16c] sm:$0x3]
        %v679 = vld [vmem:[%s2] sm:$0x1]
        %v681 = vlaneseq
        %v682 = vshrl.u32 %v681, 7
        %v683 = vsub.s32 0, %v682
        %v684 = vrot.slane %v679, %v683
        %v778 = vunpack.c.l.b16 %v587
        %v779 = vunpack.c.l.b16 %v588
        %v780 = vunpack.c.l.b16 %v589
        %v781 = vunpack.c.l.b16 %v590
        %v782 = vunpack.c.l.b16 %v591
        %v783 = vunpack.c.l.b16 %v592
        %v784 = vunpack.c.l.b16 %v593
        %v785 = vunpack.c.l.b16 %v594
        %v786 = vunpack.c.l.b16 %v595
        %v787 = vunpack.c.l.b16 %v596
        %v788 = vunpack.c.l.b16 %v597
        %v789 = vunpack.c.l.b16 %v598
        %v790 = vunpack.c.l.b16 %v599
        %v791 = vunpack.c.l.b16 %v600
        %v792 = vunpack.c.l.b16 %v601
        %v793 = vunpack.c.l.b16 %v602
        %v794 = vunpack.c.l.b16 %v603
        %v795 = vunpack.c.l.b16 %v604
        %v796 = vunpack.c.l.b16 %v605
        %v797 = vunpack.c.l.b16 %v606
        %v798 = vunpack.c.l.b16 %v607
        %v799 = vunpack.c.l.b16 %v608
        %v800 = vunpack.c.l.b16 %v609
        %v801 = vunpack.c.l.b16 %v610
        %v802 = vunpack.c.l.b16 %v611
        %v803 = vunpack.c.l.b16 %v612
        %v804 = vunpack.c.l.b16 %v613
        %v805 = vunpack.c.l.b16 %v614
        %v806 = vunpack.c.l.b16 %v615
        %v807 = vunpack.c.l.b16 %v616
        %v808 = vunpack.c.l.b16 %v617
        %v809 = vunpack.c.l.b16 %v618
        %v810 = vunpack.c.l.b16 %v619
        %v811 = vunpack.c.l.b16 %v620
        %v812 = vunpack.c.l.b16 %v621
        %v813 = vunpack.c.l.b16 %v622
        %v814 = vunpack.c.l.b16 %v623
        %v815 = vunpack.c.l.b16 %v624
        %v816 = vunpack.c.l.b16 %v625
        %v817 = vunpack.c.l.b16 %v626
        %v818 = vunpack.c.l.b16 %v627
        %v819 = vunpack.c.l.b16 %v628
        %v820 = vunpack.c.l.b16 %v629
        %v821 = vunpack.c.l.b16 %v630
        %v822 = vunpack.c.l.b16 %v631
        %v823 = vunpack.c.l.b16 %v632
        %v824 = vunpack.c.l.b16 %v633
        %v825 = vunpack.c.l.b16 %v634
        %v826 = vunpack.c.l.b16 %v635
        %v827 = vunpack.c.l.b16 %v636
        %v828 = vunpack.c.l.b16 %v637
        %v829 = vunpack.c.l.b16 %v638
        %v830 = vunpack.c.l.b16 %v639
        %v831 = vunpack.c.l.b16 %v640
        %v832 = vunpack.c.l.b16 %v641
        %v833 = vunpack.c.l.b16 %v642
        %v834 = vunpack.c.l.b16 %v643
        %v835 = vunpack.c.l.b16 %v644
        %v836 = vunpack.c.l.b16 %v645
        %v837 = vunpack.c.l.b16 %v646
        %v838 = vunpack.c.l.b16 %v647
        %v839 = vunpack.c.l.b16 %v648
        %v840 = vunpack.c.l.b16 %v649
        %v841 = vunpack.c.l.b16 %v650
        %v842 = vunpack.c.l.b16 %v651
        %v843 = vunpack.c.l.b16 %v652
        %v844 = vunpack.c.l.b16 %v653
        %v845 = vunpack.c.l.b16 %v654
        %v846 = vunpack.c.l.b16 %v655
        %v847 = vunpack.c.l.b16 %v656
        %v848 = vunpack.c.l.b16 %v657
        %v849 = vunpack.c.l.b16 %v658
        %v850 = vunpack.c.l.b16 %v659
        %v851 = vunpack.c.l.b16 %v660
        %v852 = vunpack.c.l.b16 %v661
        %v853 = vunpack.c.l.b16 %v662
        %v854 = vunpack.c.l.b16 %v663
        %v855 = vunpack.c.l.b16 %v664
        %v856 = vunpack.c.l.b16 %v665
        %v857 = vunpack.c.l.b16 %v666
        %v858 = vunpack.c.l.b16 %v667
        %v859 = vunpack.c.l.b16 %v668
        %v860 = vunpack.c.l.b16 %v669
        %v861 = vunpack.c.l.b16 %v670
        %v862 = vunpack.c.l.b16 %v671
        %v863 = vunpack.c.l.b16 %v672
        %v864 = vunpack.c.l.b16 %v673
        %v865 = vunpack.c.l.b16 %v674
        %v866 = vunpack.c.l.b16 %v675
        %v867 = vunpack.c.l.b16 %v676
        %v868 = vunpack.c.l.b16 %v677
        %v869 = vunpack.c.l.b16 %v678
        %v870 = vpack.c.b16 %v779, %v778
        %v871 = vpack.c.b16 %v781, %v780
        %v872 = vpack.c.b16 %v783, %v782
        %v873 = vpack.c.b16 %v785, %v784
        %v874 = vpack.c.b16 %v787, %v786
        %v875 = vpack.c.b16 %v789, %v788
        %v876 = vpack.c.b16 %v791, %v790
        %v877 = vpack.c.b16 %v793, %v792
        %v878 = vpack.c.b16 %v795, %v794
        %v879 = vpack.c.b16 %v797, %v796
        %v880 = vpack.c.b16 %v799, %v798
        %v881 = vpack.c.b16 %v801, %v800
        %v882 = vpack.c.b16 %v803, %v802
        %v883 = vpack.c.b16 %v805, %v804
        %v884 = vpack.c.b16 %v807, %v806
        %v885 = vpack.c.b16 %v809, %v808
        %v886 = vpack.c.b16 %v811, %v810
        %v887 = vpack.c.b16 %v813, %v812
        %v888 = vpack.c.b16 %v815, %v814
        %v889 = vpack.c.b16 %v817, %v816
        %v890 = vpack.c.b16 %v819, %v818
        %v891 = vpack.c.b16 %v821, %v820
        %v892 = vpack.c.b16 %v823, %v822
        %v893 = vpack.c.b16 %v825, %v824
        %v894 = vpack.c.b16 %v827, %v826
        %v895 = vpack.c.b16 %v829, %v828
        %v896 = vpack.c.b16 %v831, %v830
        %v897 = vpack.c.b16 %v833, %v832
        %v898 = vpack.c.b16 %v835, %v834
        %v899 = vpack.c.b16 %v837, %v836
        %v900 = vpack.c.b16 %v839, %v838
        %v901 = vpack.c.b16 %v841, %v840
        %v902 = vpack.c.b16 %v843, %v842
        %v903 = vpack.c.b16 %v845, %v844
        %v904 = vpack.c.b16 %v847, %v846
        %v905 = vpack.c.b16 %v849, %v848
        %v906 = vpack.c.b16 %v851, %v850
        %v907 = vpack.c.b16 %v853, %v852
        %v908 = vpack.c.b16 %v855, %v854
        %v909 = vpack.c.b16 %v857, %v856
        %v910 = vpack.c.b16 %v859, %v858
        %v911 = vpack.c.b16 %v861, %v860
        %v912 = vpack.c.b16 %v863, %v862
        %v913 = vpack.c.b16 %v865, %v864
        %v914 = vpack.c.b16 %v867, %v866
        %v915 = vpack.c.b16 %v869, %v868
        %vm961 = vcmask 752640
        %v963 = vsel %vm961, %v568, 0
        %v966 = vsel %vm961, %v574, 0
        %v969 = vsel %vm961, %v580, 0
        %v972 = vsel %vm961, %v586, 0
        %vm974 = vcmask 1045504
        %v976 = vsel %vm974, %v915, 0
        %978 = vmatprep.subr.bf16.mxu0 0
        %979 = vmatpush1.bf16.msra.mxu0 %v870
        %980 = vmatprep.subr.bf16.mxu0 0
        %981 = vmatpush1.bf16.msra.mxu0 %v871
        %982 = vmatprep.subr.bf16.mxu0 0
        %983 = vmatpush1.bf16.msra.mxu0 %v872
        %984 = vmatprep.subr.bf16.mxu0 0
        %985 = vmatpush1.bf16.msra.mxu0 %v873
        %986 = vmatprep.subr.bf16.mxu0 0
        %987 = vmatpush1.bf16.msra.mxu0 %v874
        %988 = vmatprep.subr.bf16.mxu0 0
        %989 = vmatpush1.bf16.msra.mxu0 %v875
        %990 = vmatprep.subr.bf16.mxu0 0
        %991 = vmatpush1.bf16.msra.mxu0 %v876
        %992 = vmatprep.subr.bf16.mxu0 0
        %993 = vmatpush1.bf16.msra.mxu0 %v877
        %994 = vmatprep.subr.bf16.mxu0 0
        %995 = vmatpush1.bf16.msra.mxu0 %v878
        %996 = vmatprep.subr.bf16.mxu0 0
        %997 = vmatpush1.bf16.msra.mxu0 %v879
        %998 = vmatprep.subr.bf16.mxu0 0
        %999 = vmatpush1.bf16.msra.mxu0 %v880
        %1000 = vmatprep.subr.bf16.mxu0 0
        %1001 = vmatpush1.bf16.msra.mxu0 %v881
        %1002 = vmatprep.subr.bf16.mxu0 0
        %1003 = vmatpush1.bf16.msra.mxu0 %v882
        %1004 = vmatprep.subr.bf16.mxu0 0
        %1005 = vmatpush1.bf16.msra.mxu0 %v883
        %1006 = vmatprep.subr.bf16.mxu0 0
        %1007 = vmatpush1.bf16.msra.mxu0 %v884
        %1008 = vmatprep.subr.bf16.mxu0 0
        %1009 = vmatpush1.bf16.msra.mxu0 %v885
        %1010 = vmatprep.mubr.bf16.mxu0 %v564
        %1011 = vmatmul.mubr.bf16.gmra.mrb[0].mxu0 %v563
        %v1012 = vpop.f32.mrb[0].mxu0
        %v1013 = vadd.f32 %v684, %v1012
        %v1014 = vpop.f32.mrb[0].mxu0
        %v1015 = vpop.f32.mrb[0].mxu0
        %v1016 = vadd.f32 %v684, %v1015
        %v1017 = vpop.f32.mrb[0].mxu0
        %1018 = vmatprep.mubr.bf16.mxu0 %v570
        %1019 = vmatmul.mubr.bf16.gmra.mrb[0].mxu0 %v569
        %v1020 = vpop.f32.mrb[0].mxu0
        %v1021 = vadd.f32 %v684, %v1020
        %v1022 = vpop.f32.mrb[0].mxu0
        %v1023 = vpop.f32.mrb[0].mxu0
        %v1024 = vadd.f32 %v684, %v1023
        %v1025 = vpop.f32.mrb[0].mxu0
        %1026 = vmatprep.mubr.bf16.mxu0 %v576
        %1027 = vmatmul.mubr.bf16.gmra.mrb[0].mxu0 %v575
        %v1028 = vpop.f32.mrb[0].mxu0
        %v1029 = vadd.f32 %v684, %v1028
        %v1030 = vpop.f32.mrb[0].mxu0
        %v1031 = vpop.f32.mrb[0].mxu0
        %v1032 = vadd.f32 %v684, %v1031
        %v1033 = vpop.f32.mrb[0].mxu0
        %1034 = vmatprep.mubr.bf16.mxu0 %v582
        %1035 = vmatmul.mubr.bf16.gmra.mrb[0].mxu0 %v581
        %v1036 = vpop.f32.mrb[0].mxu0
        %v1037 = vadd.f32 %v684, %v1036
        %v1038 = vpop.f32.mrb[0].mxu0
        %v1039 = vpop.f32.mrb[0].mxu0
        %v1040 = vadd.f32 %v684, %v1039
        %v1041 = vpop.f32.mrb[0].mxu0
        %1042 = vdwg.mxu0
        %1043 = vmatprep.subr.bf16.mxu0 0
        %1044 = vmatpush1.bf16.msra.mxu0 %v886
        %1045 = vmatprep.subr.bf16.mxu0 0
        %1046 = vmatpush1.bf16.msra.mxu0 %v887
        %1047 = vmatprep.subr.bf16.mxu0 0
        %1048 = vmatpush1.bf16.msra.mxu0 %v888
        %1049 = vmatprep.subr.bf16.mxu0 0
        %1050 = vmatpush1.bf16.msra.mxu0 %v889
        %1051 = vmatprep.subr.bf16.mxu0 0
        %1052 = vmatpush1.bf16.msra.mxu0 %v890
        %1053 = vmatprep.subr.bf16.mxu0 0
        %1054 = vmatpush1.bf16.msra.mxu0 %v891
        %1055 = vmatprep.subr.bf16.mxu0 0
        %1056 = vmatpush1.bf16.msra.mxu0 %v892
        %1057 = vmatprep.subr.bf16.mxu0 0
        %1058 = vmatpush1.bf16.msra.mxu0 %v893
        %1059 = vmatprep.subr.bf16.mxu0 0
        %1060 = vmatpush1.bf16.msra.mxu0 %v894
        %1061 = vmatprep.subr.bf16.mxu0 0
        %1062 = vmatpush1.bf16.msra.mxu0 %v895
        %1063 = vmatprep.subr.bf16.mxu0 0
        %1064 = vmatpush1.bf16.msra.mxu0 %v896
        %1065 = vmatprep.subr.bf16.mxu0 0
        %1066 = vmatpush1.bf16.msra.mxu0 %v897
        %1067 = vmatprep.subr.bf16.mxu0 0
        %1068 = vmatpush1.bf16.msra.mxu0 %v898
        %1069 = vmatprep.subr.bf16.mxu0 0
        %1070 = vmatpush1.bf16.msra.mxu0 %v899
        %1071 = vmatprep.subr.bf16.mxu0 0
        %1072 = vmatpush1.bf16.msra.mxu0 %v900
        %1073 = vmatprep.subr.bf16.mxu0 0
        %1074 = vmatpush1.bf16.msra.mxu0 %v901
        %1075 = vmatprep.mubr.bf16.mxu0 %v566
        %1076 = vmatmul.mubr.bf16.gmra.mrb[0].mxu0 %v565
        %v1077 = vpop.f32.mrb[0].mxu0
        %v1078 = vadd.f32 %v1013, %v1077
        %v1079 = vpop.f32.mrb[0].mxu0
        %v1080 = vpop.f32.mrb[0].mxu0
        %v1081 = vadd.f32 %v1016, %v1080
        %v1082 = vpop.f32.mrb[0].mxu0
        %1083 = vmatprep.mubr.bf16.mxu0 %v572
        %1084 = vmatmul.mubr.bf16.gmra.mrb[0].mxu0 %v571
        %v1085 = vpop.f32.mrb[0].mxu0
        %v1086 = vadd.f32 %v1021, %v1085
        %v1087 = vpop.f32.mrb[0].mxu0
        %v1088 = vpop.f32.mrb[0].mxu0
        %v1089 = vadd.f32 %v1024, %v1088
        %v1090 = vpop.f32.mrb[0].mxu0
        %1091 = vmatprep.mubr.bf16.mxu0 %v578
        %1092 = vmatmul.mubr.bf16.gmra.mrb[0].mxu0 %v577
        %v1093 = vpop.f32.mrb[0].mxu0
        %v1094 = vadd.f32 %v1029, %v1093
        %v1095 = vpop.f32.mrb[0].mxu0
        %v1096 = vpop.f32.mrb[0].mxu0
        %v1097 = vadd.f32 %v1032, %v1096
        %v1098 = vpop.f32.mrb[0].mxu0
        %1099 = vmatprep.mubr.bf16.mxu0 %v584
        %1100 = vmatmul.mubr.bf16.gmra.mrb[0].mxu0 %v583
        %v1101 = vpop.f32.mrb[0].mxu0
        %v1102 = vadd.f32 %v1037, %v1101
        %v1103 = vpop.f32.mrb[0].mxu0
        %v1104 = vpop.f32.mrb[0].mxu0
        %v1105 = vadd.f32 %v1040, %v1104
        %v1106 = vpop.f32.mrb[0].mxu0
        %1107 = vdwg.mxu0
        %1108 = vmatprep.subr.bf16.mxu0 0
        %1109 = vmatpush1.bf16.msra.mxu0 %v902
        %1110 = vmatprep.subr.bf16.mxu0 0
        %1111 = vmatpush1.bf16.msra.mxu0 %v903
        %1112 = vmatprep.subr.bf16.mxu0 0
        %1113 = vmatpush1.bf16.msra.mxu0 %v904
        %1114 = vmatprep.subr.bf16.mxu0 0
        %1115 = vmatpush1.bf16.msra.mxu0 %v905
        %1116 = vmatprep.subr.bf16.mxu0 0
        %1117 = vmatpush1.bf16.msra.mxu0 %v906
        %1118 = vmatprep.subr.bf16.mxu0 0
        %1119 = vmatpush1.bf16.msra.mxu0 %v907
        %1120 = vmatprep.subr.bf16.mxu0 0
        %1121 = vmatpush1.bf16.msra.mxu0 %v908
        %1122 = vmatprep.subr.bf16.mxu0 0
        %1123 = vmatpush1.bf16.msra.mxu0 %v909
        %1124 = vmatprep.subr.bf16.mxu0 0
        %1125 = vmatpush1.bf16.msra.mxu0 %v910
        %1126 = vmatprep.subr.bf16.mxu0 0
        %1127 = vmatpush1.bf16.msra.mxu0 %v911
        %1128 = vmatprep.subr.bf16.mxu0 0
        %1129 = vmatpush1.bf16.msra.mxu0 %v912
        %1130 = vmatprep.subr.bf16.mxu0 0
        %1131 = vmatpush1.bf16.msra.mxu0 %v913
        %1132 = vmatprep.subr.bf16.mxu0 0
        %1133 = vmatpush1.bf16.msra.mxu0 %v914
        %1134 = vmatprep.subr.bf16.mxu0 0
        %1135 = vmatpush1.bf16.msra.mxu0 %v976
        %1136 = vmatprep.subr.bf16.mxu0 0
        %1137 = vmatpush1.bf16.msra.mxu0 0
        %1138 = vmatprep.subr.bf16.mxu0 0
        %1139 = vmatpush1.bf16.msra.mxu0 0
        %1140 = vmatprep.mubr.bf16.mxu0 %v963
        %1141 = vmatmul.mubr.bf16.gmra.mrb[0].mxu0 %v567
        %v1142 = vpop.f32.mrb[0].mxu0
        %v1143 = vadd.f32 %v1078, %v1142
        %v1144 = vpop.f32.mrb[0].mxu0
        %v1145 = vpop.f32.mrb[0].mxu0
        %v1146 = vadd.f32 %v1081, %v1145
        %v1147 = vpop.f32.mrb[0].mxu0
        %1148 = vmatprep.mubr.bf16.mxu0 %v966
        %1149 = vmatmul.mubr.bf16.gmra.mrb[0].mxu0 %v573
        %v1150 = vpop.f32.mrb[0].mxu0
        %v1151 = vadd.f32 %v1086, %v1150
        %v1152 = vpop.f32.mrb[0].mxu0
        %v1153 = vpop.f32.mrb[0].mxu0
        %v1154 = vadd.f32 %v1089, %v1153
        %v1155 = vpop.f32.mrb[0].mxu0
        %1156 = vmatprep.mubr.bf16.mxu0 %v969
        %1157 = vmatmul.mubr.bf16.gmra.mrb[0].mxu0 %v579
        %v1158 = vpop.f32.mrb[0].mxu0
        %v1159 = vadd.f32 %v1094, %v1158
        %v1160 = vpop.f32.mrb[0].mxu0
        %v1161 = vpop.f32.mrb[0].mxu0
        %v1162 = vadd.f32 %v1097, %v1161
        %v1163 = vpop.f32.mrb[0].mxu0
        %1164 = vmatprep.mubr.bf16.mxu0 %v972
        %1165 = vmatmul.mubr.bf16.gmra.mrb[0].mxu0 %v585
        %v1166 = vpop.f32.mrb[0].mxu0
        %v1167 = vadd.f32 %v1102, %v1166
        %v1168 = vpop.f32.mrb[0].mxu0
        %v1169 = vpop.f32.mrb[0].mxu0
        %v1170 = vadd.f32 %v1105, %v1169
        %v1171 = vpop.f32.mrb[0].mxu0
        %1172 = vdwg.mxu0
        %v1173 = vmax.f32 %v1143, 0.0
        %v1174 = vmax.f32 %v1146, 0.0
        %v1175 = vmax.f32 %v1151, 0.0
        %v1176 = vmax.f32 %v1154, 0.0
        %v1177 = vmax.f32 %v1159, 0.0
        %v1178 = vmax.f32 %v1162, 0.0
        %v1179 = vmax.f32 %v1167, 0.0
        %v1180 = vmax.f32 %v1170, 0.0
        %v1181 = vpack.c.bf16 %v1174, %v1173
        %v1182 = vpack.c.bf16 %v1176, %v1175
        %v1183 = vpack.c.bf16 %v1178, %v1177
        %v1184 = vpack.c.bf16 %v1180, %v1179
        %v1185 = vld [vmem:[%s3] sm:$0xf]
        %v1186 = vld [vmem:[%s3 + $0x4] sm:$0xf]
        %v1187 = vld [vmem:[%s3 + $0x8] sm:$0xf]
        %v1188 = vld [vmem:[%s3 + $0xc] sm:$0xf]
        %v1189 = vld [vmem:[%s3 + $0x10] sm:$0xf]
        %v1190 = vld [vmem:[%s3 + $0x14] sm:$0xf]
        %v1191 = vld [vmem:[%s3 + $0x18] sm:$0xf]
        %v1192 = vld [vmem:[%s3 + $0x1c] sm:$0xf]
        %v1193 = vld [vmem:[%s3 + $0x20] sm:$0xf]
        %v1194 = vld [vmem:[%s3 + $0x24] sm:$0xf]
        %v1195 = vld [vmem:[%s3 + $0x28] sm:$0xf]
        %v1196 = vld [vmem:[%s3 + $0x2c] sm:$0xf]
        %v1197 = vld [vmem:[%s3 + $0x30] sm:$0xf]
        %v1198 = vld [vmem:[%s3 + $0x34] sm:$0xf]
        %v1199 = vld [vmem:[%s3 + $0x38] sm:$0xf]
        %v1200 = vld [vmem:[%s3 + $0x3c] sm:$0xf]
        %v1201 = vld [vmem:[%s4] sm:$0x1]
        %v1203 = vlaneseq
        %v1204 = vshrl.u32 %v1203, 7
        %v1205 = vsub.s32 0, %v1204
        %v1206 = vrot.slane %v1201, %v1205
        %v1224 = vunpack.c.l.b16 %v1185
        %v1225 = vunpack.c.l.b16 %v1186
        %v1226 = vunpack.c.l.b16 %v1187
        %v1227 = vunpack.c.l.b16 %v1188
        %v1228 = vunpack.c.l.b16 %v1189
        %v1229 = vunpack.c.l.b16 %v1190
        %v1230 = vunpack.c.l.b16 %v1191
        %v1231 = vunpack.c.l.b16 %v1192
        %v1232 = vunpack.c.l.b16 %v1193
        %v1233 = vunpack.c.l.b16 %v1194
        %v1234 = vunpack.c.l.b16 %v1195
        %v1235 = vunpack.c.l.b16 %v1196
        %v1236 = vunpack.c.l.b16 %v1197
        %v1237 = vunpack.c.l.b16 %v1198
        %v1238 = vunpack.c.l.b16 %v1199
        %v1239 = vunpack.c.l.b16 %v1200
        %v1240 = vpack.c.b16 %v1225, %v1224
        %v1241 = vpack.c.b16 %v1227, %v1226
        %v1242 = vpack.c.b16 %v1229, %v1228
        %v1243 = vpack.c.b16 %v1231, %v1230
        %v1244 = vpack.c.b16 %v1233, %v1232
        %v1245 = vpack.c.b16 %v1235, %v1234
        %v1246 = vpack.c.b16 %v1237, %v1236
        %v1247 = vpack.c.b16 %v1239, %v1238
        %1256 = vmatprep.subr.bf16.mxu0 0
        %1257 = vmatpush1.bf16.msra.mxu0 %v1240
        %1258 = vmatprep.subr.bf16.mxu0 0
        %1259 = vmatpush1.bf16.msra.mxu0 %v1241
        %1260 = vmatprep.subr.bf16.mxu0 0
        %1261 = vmatpush1.bf16.msra.mxu0 %v1242
        %1262 = vmatprep.subr.bf16.mxu0 0
        %1263 = vmatpush1.bf16.msra.mxu0 %v1243
        %1264 = vmatprep.subr.bf16.mxu0 0
        %1265 = vmatpush1.bf16.msra.mxu0 %v1244
        %1266 = vmatprep.subr.bf16.mxu0 0
        %1267 = vmatpush1.bf16.msra.mxu0 %v1245
        %1268 = vmatprep.subr.bf16.mxu0 0
        %1269 = vmatpush1.bf16.msra.mxu0 %v1246
        %1270 = vmatprep.subr.bf16.mxu0 0
        %1271 = vmatpush1.bf16.msra.mxu0 %v1247
        %1272 = vmatprep.subr.bf16.mxu0 0
        %1273 = vmatpush1.bf16.msra.mxu0 0
        %1274 = vmatprep.subr.bf16.mxu0 0
        %1275 = vmatpush1.bf16.msra.mxu0 0
        %1276 = vmatprep.subr.bf16.mxu0 0
        %1277 = vmatpush1.bf16.msra.mxu0 0
        %1278 = vmatprep.subr.bf16.mxu0 0
        %1279 = vmatpush1.bf16.msra.mxu0 0
        %1280 = vmatprep.subr.bf16.mxu0 0
        %1281 = vmatpush1.bf16.msra.mxu0 0
        %1282 = vmatprep.subr.bf16.mxu0 0
        %1283 = vmatpush1.bf16.msra.mxu0 0
        %1284 = vmatprep.subr.bf16.mxu0 0
        %1285 = vmatpush1.bf16.msra.mxu0 0
        %1286 = vmatprep.subr.bf16.mxu0 0
        %1287 = vmatpush1.bf16.msra.mxu0 0
        %1288 = vmatprep.mubr.bf16.mxu0 0
        %1289 = vmatmul.mubr.bf16.gmra.mrb[0].mxu0 %v1181
        %v1290 = vpop.f32.mrb[0].mxu0
        %v1291 = vadd.f32 %v1206, %v1290
        %v1292 = vpop.f32.mrb[0].mxu0
        %v1293 = vpop.f32.mrb[0].mxu0
        %v1294 = vadd.f32 %v1206, %v1293
        %v1295 = vpop.f32.mrb[0].mxu0
        %1296 = vmatprep.mubr.bf16.mxu0 0
        %1297 = vmatmul.mubr.bf16.gmra.mrb[0].mxu0 %v1182
        %v1298 = vpop.f32.mrb[0].mxu0
        %v1299 = vadd.f32 %v1206, %v1298
        %v1300 = vpop.f32.mrb[0].mxu0
        %v1301 = vpop.f32.mrb[0].mxu0
        %v1302 = vadd.f32 %v1206, %v1301
        %v1303 = vpop.f32.mrb[0].mxu0
        %1304 = vmatprep.mubr.bf16.mxu0 0
        %1305 = vmatmul.mubr.bf16.gmra.mrb[0].mxu0 %v1183
        %v1306 = vpop.f32.mrb[0].mxu0
        %v1307 = vadd.f32 %v1206, %v1306
        %v1308 = vpop.f32.mrb[0].mxu0
        %v1309 = vpop.f32.mrb[0].mxu0
        %v1310 = vadd.f32 %v1206, %v1309
        %v1311 = vpop.f32.mrb[0].mxu0
        %1312 = vmatprep.mubr.bf16.mxu0 0
        %1313 = vmatmul.mubr.bf16.gmra.mrb[0].mxu0 %v1184
        %v1314 = vpop.f32.mrb[0].mxu0
        %v1315 = vadd.f32 %v1206, %v1314
        %v1316 = vpop.f32.mrb[0].mxu0
        %v1317 = vpop.f32.mrb[0].mxu0
        %v1318 = vadd.f32 %v1206, %v1317
        %v1319 = vpop.f32.mrb[0].mxu0
        %1320 = vdwg.mxu0
        %v1321 = vmax.f32 %v1291, 0.0
        %v1322 = vmax.f32 %v1294, 0.0
        %v1323 = vmax.f32 %v1299, 0.0
        %v1324 = vmax.f32 %v1302, 0.0
        %v1325 = vmax.f32 %v1307, 0.0
        %v1326 = vmax.f32 %v1310, 0.0
        %v1327 = vmax.f32 %v1315, 0.0
        %v1328 = vmax.f32 %v1318, 0.0
        %v1329 = vpack.c.bf16 %v1322, %v1321
        %v1330 = vpack.c.bf16 %v1324, %v1323
        %v1331 = vpack.c.bf16 %v1326, %v1325
        %v1332 = vpack.c.bf16 %v1328, %v1327
        %v1333 = vld [vmem:[%s5] sm:$0xf]
        %v1334 = vld [vmem:[%s5 + $0x4] sm:$0xf]
        %v1335 = vld [vmem:[%s5 + $0x8] sm:$0xf]
        %v1336 = vld [vmem:[%s5 + $0xc] sm:$0xf]
        %v1337 = vld [vmem:[%s5 + $0x10] sm:$0xf]
        %v1338 = vld [vmem:[%s5 + $0x14] sm:$0xf]
        %v1339 = vld [vmem:[%s5 + $0x18] sm:$0xf]
        %v1340 = vld [vmem:[%s5 + $0x1c] sm:$0xf]
        %v1341 = vld [vmem:[%s6] sm:$0x1]
        %v1343 = vlaneseq
        %v1344 = vshrl.u32 %v1343, 7
        %v1345 = vsub.s32 0, %v1344
        %v1346 = vrot.slane %v1341, %v1345
        %v1356 = vunpack.c.l.b16 %v1333
        %v1357 = vunpack.c.l.b16 %v1334
        %v1358 = vunpack.c.l.b16 %v1335
        %v1359 = vunpack.c.l.b16 %v1336
        %v1360 = vunpack.c.l.b16 %v1337
        %v1361 = vunpack.c.l.b16 %v1338
        %v1362 = vunpack.c.l.b16 %v1339
        %v1363 = vunpack.c.l.b16 %v1340
        %v1364 = vpack.c.b16 %v1357, %v1356
        %v1365 = vpack.c.b16 %v1359, %v1358
        %v1366 = vpack.c.b16 %v1361, %v1360
        %v1367 = vpack.c.b16 %v1363, %v1362
        %vm1372 = vcmask 523264
        %v1374 = vsel %vm1372, %v1329, 0
        %v1377 = vsel %vm1372, %v1330, 0
        %v1380 = vsel %vm1372, %v1331, 0
        %v1383 = vsel %vm1372, %v1332, 0
        %1385 = vmatprep.subr.bf16.mxu0 0
        %1386 = vmatpush1.bf16.msra.mxu0 %v1364
        %1387 = vmatprep.subr.bf16.mxu0 0
        %1388 = vmatpush1.bf16.msra.mxu0 %v1365
        %1389 = vmatprep.subr.bf16.mxu0 0
        %1390 = vmatpush1.bf16.msra.mxu0 %v1366
        %1391 = vmatprep.subr.bf16.mxu0 0
        %1392 = vmatpush1.bf16.msra.mxu0 %v1367
        %1393 = vmatprep.subr.bf16.mxu0 0
        %1394 = vmatpush1.bf16.msra.mxu0 0
        %1395 = vmatprep.subr.bf16.mxu0 0
        %1396 = vmatpush1.bf16.msra.mxu0 0
        %1397 = vmatprep.subr.bf16.mxu0 0
        %1398 = vmatpush1.bf16.msra.mxu0 0
        %1399 = vmatprep.subr.bf16.mxu0 0
        %1400 = vmatpush1.bf16.msra.mxu0 0
        %1401 = vmatprep.subr.bf16.mxu0 0
        %1402 = vmatpush1.bf16.msra.mxu0 0
        %1403 = vmatprep.subr.bf16.mxu0 0
        %1404 = vmatpush1.bf16.msra.mxu0 0
        %1405 = vmatprep.subr.bf16.mxu0 0
        %1406 = vmatpush1.bf16.msra.mxu0 0
        %1407 = vmatprep.subr.bf16.mxu0 0
        %1408 = vmatpush1.bf16.msra.mxu0 0
        %1409 = vmatprep.subr.bf16.mxu0 0
        %1410 = vmatpush1.bf16.msra.mxu0 0
        %1411 = vmatprep.subr.bf16.mxu0 0
        %1412 = vmatpush1.bf16.msra.mxu0 0
        %1413 = vmatprep.subr.bf16.mxu0 0
        %1414 = vmatpush1.bf16.msra.mxu0 0
        %1415 = vmatprep.subr.bf16.mxu0 0
        %1416 = vmatpush1.bf16.msra.mxu0 0
        %1417 = vmatprep.mubr.bf16.mxu0 0
        %1418 = vmatmul.mubr.bf16.gmra.mrb[0].mxu0 %v1374
        %v1419 = vpop.f32.mrb[0].mxu0
        %v1420 = vadd.f32 %v1346, %v1419
        %v1421 = vpop.f32.mrb[0].mxu0
        %v1422 = vpop.f32.mrb[0].mxu0
        %v1423 = vadd.f32 %v1346, %v1422
        %v1424 = vpop.f32.mrb[0].mxu0
        %1425 = vmatprep.mubr.bf16.mxu0 0
        %1426 = vmatmul.mubr.bf16.gmra.mrb[0].mxu0 %v1377
        %v1427 = vpop.f32.mrb[0].mxu0
        %v1428 = vadd.f32 %v1346, %v1427
        %v1429 = vpop.f32.mrb[0].mxu0
        %v1430 = vpop.f32.mrb[0].mxu0
        %v1431 = vadd.f32 %v1346, %v1430
        %v1432 = vpop.f32.mrb[0].mxu0
        %1433 = vmatprep.mubr.bf16.mxu0 0
        %1434 = vmatmul.mubr.bf16.gmra.mrb[0].mxu0 %v1380
        %v1435 = vpop.f32.mrb[0].mxu0
        %v1436 = vadd.f32 %v1346, %v1435
        %v1437 = vpop.f32.mrb[0].mxu0
        %v1438 = vpop.f32.mrb[0].mxu0
        %v1439 = vadd.f32 %v1346, %v1438
        %v1440 = vpop.f32.mrb[0].mxu0
        %1441 = vmatprep.mubr.bf16.mxu0 0
        %1442 = vmatmul.mubr.bf16.gmra.mrb[0].mxu0 %v1383
        %v1443 = vpop.f32.mrb[0].mxu0
        %v1444 = vadd.f32 %v1346, %v1443
        %v1445 = vpop.f32.mrb[0].mxu0
        %v1446 = vpop.f32.mrb[0].mxu0
        %v1447 = vadd.f32 %v1346, %v1446
        %v1448 = vpop.f32.mrb[0].mxu0
        %1449 = vdwg.mxu0
        %vm1450 = vcmask 97280
        %1451 = vst.msk [vmem:[%s478] sm:$0xff] %vm1450, %v1420
        %1452 = vst.msk [vmem:[%s478 + $0x8] sm:$0xff] %vm1450, %v1423
        %1453 = vst.msk [vmem:[%s478 + $0x10] sm:$0xff] %vm1450, %v1428
        %1454 = vst.msk [vmem:[%s478 + $0x18] sm:$0xff] %vm1450, %v1431
        %1455 = vst.msk [vmem:[%s478 + $0x20] sm:$0xff] %vm1450, %v1436
        %1456 = vst.msk [vmem:[%s478 + $0x28] sm:$0xff] %vm1450, %v1439
        %1457 = vst.msk [vmem:[%s478 + $0x30] sm:$0xff] %vm1450, %v1444
        %1458 = vst.msk [vmem:[%s478 + $0x38] sm:$0xff] %vm1450, %v1447
        %v1459 = vpack.c.bf16 %v1423, %v1420
        %v1460 = vpack.c.bf16 %v1431, %v1428
        %v1461 = vpack.c.bf16 %v1439, %v1436
        %v1462 = vpack.c.bf16 %v1447, %v1444
        %v1463 = vld [vmem:[%s7] sm:$0xf]
        %v1464 = vld [vmem:[%s7 + $0x4] sm:$0x3]
        %v1465 = vld [vmem:[%s8] sm:$0x1]
        %v1467 = vlaneseq
        %v1468 = vshrl.u32 %v1467, 7
        %v1469 = vsub.s32 0, %v1468
        %v1470 = vrot.slane %v1465, %v1469
        %v1474 = vunpack.c.l.b16 %v1463
        %v1475 = vunpack.c.l.b16 %v1464
        %v1476 = vpack.c.b16 %v1475, %v1474
        %v1478 = vsel %vm1450, %v1459, 0
        %v1481 = vsel %vm1450, %v1460, 0
        %v1484 = vsel %vm1450, %v1461, 0
        %v1487 = vsel %vm1450, %v1462, 0
        %v1490 = vsel %vm974, %v1476, 0
        %1492 = vmatprep.subr.bf16.mxu0 0
        %1493 = vmatpush1.bf16.msra.mxu0 %v1490
        %1494 = vmatprep.subr.bf16.mxu0 0
        %1495 = vmatpush1.bf16.msra.mxu0 0
        %1496 = vmatprep.subr.bf16.mxu0 0
        %1497 = vmatpush1.bf16.msra.mxu0 0
        %1498 = vmatprep.subr.bf16.mxu0 0
        %1499 = vmatpush1.bf16.msra.mxu0 0
        %1500 = vmatprep.subr.bf16.mxu0 0
        %1501 = vmatpush1.bf16.msra.mxu0 0
        %1502 = vmatprep.subr.bf16.mxu0 0
        %1503 = vmatpush1.bf16.msra.mxu0 0
        %1504 = vmatprep.subr.bf16.mxu0 0
        %1505 = vmatpush1.bf16.msra.mxu0 0
        %1506 = vmatprep.subr.bf16.mxu0 0
        %1507 = vmatpush1.bf16.msra.mxu0 0
        %1508 = vmatprep.subr.bf16.mxu0 0
        %1509 = vmatpush1.bf16.msra.mxu0 0
        %1510 = vmatprep.subr.bf16.mxu0 0
        %1511 = vmatpush1.bf16.msra.mxu0 0
        %1512 = vmatprep.subr.bf16.mxu0 0
        %1513 = vmatpush1.bf16.msra.mxu0 0
        %1514 = vmatprep.subr.bf16.mxu0 0
        %1515 = vmatpush1.bf16.msra.mxu0 0
        %1516 = vmatprep.subr.bf16.mxu0 0
        %1517 = vmatpush1.bf16.msra.mxu0 0
        %1518 = vmatprep.subr.bf16.mxu0 0
        %1519 = vmatpush1.bf16.msra.mxu0 0
        %1520 = vmatprep.subr.bf16.mxu0 0
        %1521 = vmatpush1.bf16.msra.mxu0 0
        %1522 = vmatprep.subr.bf16.mxu0 0
        %1523 = vmatpush1.bf16.msra.mxu0 0
        %1524 = vmatprep.mubr.bf16.mxu0 0
        %1525 = vmatmul.mubr.bf16.gmra.mrb[0].mxu0 %v1478
        %v1526 = vpop.f32.mrb[0].mxu0
        %v1527 = vadd.f32 %v1470, %v1526
        %v1528 = vpop.f32.mrb[0].mxu0
        %v1529 = vpop.f32.mrb[0].mxu0
        %v1530 = vadd.f32 %v1470, %v1529
        %v1531 = vpop.f32.mrb[0].mxu0
        %1532 = vmatprep.mubr.bf16.mxu0 0
        %1533 = vmatmul.mubr.bf16.gmra.mrb[0].mxu0 %v1481
        %v1534 = vpop.f32.mrb[0].mxu0
        %v1535 = vadd.f32 %v1470, %v1534
        %v1536 = vpop.f32.mrb[0].mxu0
        %v1537 = vpop.f32.mrb[0].mxu0
        %v1538 = vadd.f32 %v1470, %v1537
        %v1539 = vpop.f32.mrb[0].mxu0
        %1540 = vmatprep.mubr.bf16.mxu0 0
        %1541 = vmatmul.mubr.bf16.gmra.mrb[0].mxu0 %v1484
        %v1542 = vpop.f32.mrb[0].mxu0
        %v1543 = vadd.f32 %v1470, %v1542
        %v1544 = vpop.f32.mrb[0].mxu0
        %v1545 = vpop.f32.mrb[0].mxu0
        %v1546 = vadd.f32 %v1470, %v1545
        %v1547 = vpop.f32.mrb[0].mxu0
        %1548 = vmatprep.mubr.bf16.mxu0 0
        %1549 = vmatmul.mubr.bf16.gmra.mrb[0].mxu0 %v1487
        %v1550 = vpop.f32.mrb[0].mxu0
        %v1551 = vadd.f32 %v1470, %v1550
        %v1552 = vpop.f32.mrb[0].mxu0
        %v1553 = vpop.f32.mrb[0].mxu0
        %v1554 = vadd.f32 %v1470, %v1553
        %v1555 = vpop.f32.mrb[0].mxu0
        %1556 = vdwg.mxu0
        %v1557 = vmax.f32 %v1527, 0.0
        %v1558 = vmax.f32 %v1530, 0.0
        %v1559 = vmax.f32 %v1535, 0.0
        %v1560 = vmax.f32 %v1538, 0.0
        %v1561 = vmax.f32 %v1543, 0.0
        %v1562 = vmax.f32 %v1546, 0.0
        %v1563 = vmax.f32 %v1551, 0.0
        %v1564 = vmax.f32 %v1554, 0.0
        %v1565 = vpack.c.bf16 %v1558, %v1557
        %v1566 = vpack.c.bf16 %v1560, %v1559
        %v1567 = vpack.c.bf16 %v1562, %v1561
        %v1568 = vpack.c.bf16 %v1564, %v1563
        %v1569 = vld [vmem:[%s9] sm:$0xf]
        %v1570 = vld [vmem:[%s9 + $0x4] sm:$0xf]
        %v1571 = vld [vmem:[%s9 + $0x8] sm:$0xf]
        %v1572 = vld [vmem:[%s9 + $0xc] sm:$0xf]
        %v1573 = vld [vmem:[%s9 + $0x10] sm:$0xf]
        %v1574 = vld [vmem:[%s9 + $0x14] sm:$0xf]
        %v1575 = vld [vmem:[%s9 + $0x18] sm:$0xf]
        %v1576 = vld [vmem:[%s9 + $0x1c] sm:$0xf]
        %v1577 = vld [vmem:[%s10] sm:$0x1]
        %v1579 = vlaneseq
        %v1580 = vshrl.u32 %v1579, 7
        %v1581 = vsub.s32 0, %v1580
        %v1582 = vrot.slane %v1577, %v1581
        %v1592 = vunpack.c.l.b16 %v1569
        %v1593 = vunpack.c.l.b16 %v1570
        %v1594 = vunpack.c.l.b16 %v1571
        %v1595 = vunpack.c.l.b16 %v1572
        %v1596 = vunpack.c.l.b16 %v1573
        %v1597 = vunpack.c.l.b16 %v1574
        %v1598 = vunpack.c.l.b16 %v1575
        %v1599 = vunpack.c.l.b16 %v1576
        %v1600 = vpack.c.b16 %v1593, %v1592
        %v1601 = vpack.c.b16 %v1595, %v1594
        %v1602 = vpack.c.b16 %v1597, %v1596
        %v1603 = vpack.c.b16 %v1599, %v1598
        %v1609 = vsel %vm1372, %v1565, 0
        %v1612 = vsel %vm1372, %v1566, 0
        %v1615 = vsel %vm1372, %v1567, 0
        %v1618 = vsel %vm1372, %v1568, 0
        %1620 = vmatprep.subr.bf16.mxu0 0
        %1621 = vmatpush1.bf16.msra.mxu0 %v1600
        %1622 = vmatprep.subr.bf16.mxu0 0
        %1623 = vmatpush1.bf16.msra.mxu0 %v1601
        %1624 = vmatprep.subr.bf16.mxu0 0
        %1625 = vmatpush1.bf16.msra.mxu0 %v1602
        %1626 = vmatprep.subr.bf16.mxu0 0
        %1627 = vmatpush1.bf16.msra.mxu0 %v1603
        %1628 = vmatprep.subr.bf16.mxu0 0
        %1629 = vmatpush1.bf16.msra.mxu0 0
        %1630 = vmatprep.subr.bf16.mxu0 0
        %1631 = vmatpush1.bf16.msra.mxu0 0
        %1632 = vmatprep.subr.bf16.mxu0 0
        %1633 = vmatpush1.bf16.msra.mxu0 0
        %1634 = vmatprep.subr.bf16.mxu0 0
        %1635 = vmatpush1.bf16.msra.mxu0 0
        %1636 = vmatprep.subr.bf16.mxu0 0
        %1637 = vmatpush1.bf16.msra.mxu0 0
        %1638 = vmatprep.subr.bf16.mxu0 0
        %1639 = vmatpush1.bf16.msra.mxu0 0
        %1640 = vmatprep.subr.bf16.mxu0 0
        %1641 = vmatpush1.bf16.msra.mxu0 0
        %1642 = vmatprep.subr.bf16.mxu0 0
        %1643 = vmatpush1.bf16.msra.mxu0 0
        %1644 = vmatprep.subr.bf16.mxu0 0
        %1645 = vmatpush1.bf16.msra.mxu0 0
        %1646 = vmatprep.subr.bf16.mxu0 0
        %1647 = vmatpush1.bf16.msra.mxu0 0
        %1648 = vmatprep.subr.bf16.mxu0 0
        %1649 = vmatpush1.bf16.msra.mxu0 0
        %1650 = vmatprep.subr.bf16.mxu0 0
        %1651 = vmatpush1.bf16.msra.mxu0 0
        %1652 = vmatprep.mubr.bf16.mxu0 0
        %1653 = vmatmul.mubr.bf16.gmra.mrb[0].mxu0 %v1609
        %v1654 = vpop.f32.mrb[0].mxu0
        %v1655 = vadd.f32 %v1582, %v1654
        %v1656 = vpop.f32.mrb[0].mxu0
        %v1657 = vpop.f32.mrb[0].mxu0
        %v1658 = vadd.f32 %v1582, %v1657
        %v1659 = vpop.f32.mrb[0].mxu0
        %1660 = vmatprep.mubr.bf16.mxu0 0
        %1661 = vmatmul.mubr.bf16.gmra.mrb[0].mxu0 %v1612
        %v1662 = vpop.f32.mrb[0].mxu0
        %v1663 = vadd.f32 %v1582, %v1662
        %v1664 = vpop.f32.mrb[0].mxu0
        %v1665 = vpop.f32.mrb[0].mxu0
        %v1666 = vadd.f32 %v1582, %v1665
        %v1667 = vpop.f32.mrb[0].mxu0
        %1668 = vmatprep.mubr.bf16.mxu0 0
        %1669 = vmatmul.mubr.bf16.gmra.mrb[0].mxu0 %v1615
        %v1670 = vpop.f32.mrb[0].mxu0
        %v1671 = vadd.f32 %v1582, %v1670
        %v1672 = vpop.f32.mrb[0].mxu0
        %v1673 = vpop.f32.mrb[0].mxu0
        %v1674 = vadd.f32 %v1582, %v1673
        %v1675 = vpop.f32.mrb[0].mxu0
        %1676 = vmatprep.mubr.bf16.mxu0 0
        %1677 = vmatmul.mubr.bf16.gmra.mrb[0].mxu0 %v1618
        %v1678 = vpop.f32.mrb[0].mxu0
        %v1679 = vadd.f32 %v1582, %v1678
        %v1680 = vpop.f32.mrb[0].mxu0
        %v1681 = vpop.f32.mrb[0].mxu0
        %v1682 = vadd.f32 %v1582, %v1681
        %v1683 = vpop.f32.mrb[0].mxu0
        %1684 = vdwg.mxu0
        %v1685 = vmax.f32 %v1655, 0.0
        %v1686 = vmax.f32 %v1658, 0.0
        %v1687 = vmax.f32 %v1663, 0.0
        %v1688 = vmax.f32 %v1666, 0.0
        %v1689 = vmax.f32 %v1671, 0.0
        %v1690 = vmax.f32 %v1674, 0.0
        %v1691 = vmax.f32 %v1679, 0.0
        %v1692 = vmax.f32 %v1682, 0.0
        %v1693 = vpack.c.bf16 %v1686, %v1685
        %v1694 = vpack.c.bf16 %v1688, %v1687
        %v1695 = vpack.c.bf16 %v1690, %v1689
        %v1696 = vpack.c.bf16 %v1692, %v1691
        %v1697 = vld [vmem:[%s11] sm:$0xff]
        %v1698 = vld [vmem:[%s11 + $0x8] sm:$0xff]
        %v1699 = vld [vmem:[%s11 + $0x10] sm:$0xff]
        %v1700 = vld [vmem:[%s11 + $0x18] sm:$0xff]
        %v1701 = vld [vmem:[%s11 + $0x20] sm:$0xff]
        %v1702 = vld [vmem:[%s11 + $0x28] sm:$0xff]
        %v1703 = vld [vmem:[%s11 + $0x30] sm:$0xff]
        %v1704 = vld [vmem:[%s11 + $0x38] sm:$0xff]
        %v1705 = vld [vmem:[%s11 + $0x40] sm:$0xff]
        %v1706 = vld [vmem:[%s11 + $0x48] sm:$0xff]
        %v1707 = vld [vmem:[%s11 + $0x50] sm:$0xff]
        %v1708 = vld [vmem:[%s11 + $0x58] sm:$0xff]
        %v1709 = vld [vmem:[%s11 + $0x60] sm:$0xff]
        %v1710 = vld [vmem:[%s11 + $0x68] sm:$0xff]
        %v1711 = vld [vmem:[%s11 + $0x70] sm:$0xff]
        %v1712 = vld [vmem:[%s11 + $0x78] sm:$0xff]
        %v1713 = vld [vmem:[%s11 + $0x80] sm:$0xff]
        %v1714 = vld [vmem:[%s11 + $0x88] sm:$0xff]
        %v1715 = vld [vmem:[%s11 + $0x90] sm:$0xff]
        %v1716 = vld [vmem:[%s11 + $0x98] sm:$0xff]
        %v1717 = vld [vmem:[%s11 + $0xa0] sm:$0xff]
        %v1718 = vld [vmem:[%s11 + $0xa8] sm:$0xff]
        %v1719 = vld [vmem:[%s11 + $0xb0] sm:$0xff]
        %v1720 = vld [vmem:[%s11 + $0xb8] sm:$0xff]
        %v1721 = vld [vmem:[%s11 + $0xc0] sm:$0xff]
        %v1722 = vld [vmem:[%s11 + $0xc8] sm:$0xff]
        %v1723 = vld [vmem:[%s11 + $0xd0] sm:$0xff]
        %v1724 = vld [vmem:[%s11 + $0xd8] sm:$0xff]
        %v1725 = vld [vmem:[%s11 + $0xe0] sm:$0xff]
        %v1726 = vld [vmem:[%s11 + $0xe8] sm:$0xff]
        %v1727 = vld [vmem:[%s11 + $0xf0] sm:$0xff]
        %v1728 = vld [vmem:[%s11 + $0xf8] sm:$0xff]
        %v1729 = vld [vmem:[%s11 + $0x100] sm:$0xff]
        %v1730 = vld [vmem:[%s11 + $0x108] sm:$0xff]
        %v1731 = vld [vmem:[%s11 + $0x110] sm:$0xff]
        %v1732 = vld [vmem:[%s11 + $0x118] sm:$0xff]
        %v1733 = vld [vmem:[%s11 + $0x120] sm:$0xff]
        %v1734 = vld [vmem:[%s11 + $0x128] sm:$0xff]
        %v1735 = vld [vmem:[%s11 + $0x130] sm:$0xff]
        %v1736 = vld [vmem:[%s11 + $0x138] sm:$0xff]
        %v1737 = vld [vmem:[%s11 + $0x140] sm:$0xff]
        %v1738 = vld [vmem:[%s11 + $0x148] sm:$0xff]
        %v1739 = vld [vmem:[%s11 + $0x150] sm:$0xff]
        %v1740 = vld [vmem:[%s11 + $0x158] sm:$0xff]
        %v1741 = vld [vmem:[%s11 + $0x160] sm:$0xff]
        %v1742 = vld [vmem:[%s11 + $0x168] sm:$0xff]
        %v1743 = vld [vmem:[%s11 + $0x170] sm:$0xff]
        %v1744 = vld [vmem:[%s11 + $0x178] sm:$0xff]
        %v1745 = vld [vmem:[%s12] sm:$0x3f]
        %v1747 = vlaneseq
        %v1748 = vshrl.u32 %v1747, 7
        %v1749 = vsub.s32 0, %v1748
        %v1750 = vrot.slane %v1745, %v1749
        %v1751 = vlaneseq
        %v1752 = vshrl.u32 %v1751, 7
        %v1753 = vsub.s32 1, %v1752
        %v1754 = vrot.slane %v1745, %v1753
        %v1755 = vlaneseq
        %v1756 = vshrl.u32 %v1755, 7
        %v1757 = vsub.s32 2, %v1756
        %v1758 = vrot.slane %v1745, %v1757
        %v1759 = vlaneseq
        %v1760 = vshrl.u32 %v1759, 7
        %v1761 = vsub.s32 3, %v1760
        %v1762 = vrot.slane %v1745, %v1761
        %v1763 = vlaneseq
        %v1764 = vshrl.u32 %v1763, 7
        %v1765 = vsub.s32 4, %v1764
        %v1766 = vrot.slane %v1745, %v1765
        %v1767 = vlaneseq
        %v1768 = vshrl.u32 %v1767, 7
        %v1769 = vsub.s32 5, %v1768
        %v1770 = vrot.slane %v1745, %v1769
        %v1825 = vunpack.c.l.b16 %v1697
        %v1826 = vunpack.c.h.b16 %v1697
        %v1827 = vunpack.c.l.b16 %v1698
        %v1828 = vunpack.c.h.b16 %v1698
        %v1829 = vunpack.c.l.b16 %v1699
        %v1830 = vunpack.c.h.b16 %v1699
        %v1831 = vunpack.c.l.b16 %v1700
        %v1832 = vunpack.c.h.b16 %v1700
        %v1833 = vunpack.c.l.b16 %v1701
        %v1834 = vunpack.c.h.b16 %v1701
        %v1835 = vunpack.c.l.b16 %v1702
        %v1836 = vunpack.c.h.b16 %v1702
        %v1837 = vunpack.c.l.b16 %v1703
        %v1838 = vunpack.c.h.b16 %v1703
        %v1839 = vunpack.c.l.b16 %v1704
        %v1840 = vunpack.c.h.b16 %v1704
        %v1841 = vunpack.c.l.b16 %v1705
        %v1842 = vunpack.c.h.b16 %v1705
        %v1843 = vunpack.c.l.b16 %v1706
        %v1844 = vunpack.c.h.b16 %v1706
        %v1845 = vunpack.c.l.b16 %v1707
        %v1846 = vunpack.c.h.b16 %v1707
        %v1847 = vunpack.c.l.b16 %v1708
        %v1848 = vunpack.c.h.b16 %v1708
        %v1849 = vunpack.c.l.b16 %v1709
        %v1850 = vunpack.c.h.b16 %v1709
        %v1851 = vunpack.c.l.b16 %v1710
        %v1852 = vunpack.c.h.b16 %v1710
        %v1853 = vunpack.c.l.b16 %v1711
        %v1854 = vunpack.c.h.b16 %v1711
        %v1855 = vunpack.c.l.b16 %v1712
        %v1856 = vunpack.c.h.b16 %v1712
        %v1857 = vunpack.c.l.b16 %v1713
        %v1858 = vunpack.c.h.b16 %v1713
        %v1859 = vunpack.c.l.b16 %v1714
        %v1860 = vunpack.c.h.b16 %v1714
        %v1861 = vunpack.c.l.b16 %v1715
        %v1862 = vunpack.c.h.b16 %v1715
        %v1863 = vunpack.c.l.b16 %v1716
        %v1864 = vunpack.c.h.b16 %v1716
        %v1865 = vunpack.c.l.b16 %v1717
        %v1866 = vunpack.c.h.b16 %v1717
        %v1867 = vunpack.c.l.b16 %v1718
        %v1868 = vunpack.c.h.b16 %v1718
        %v1869 = vunpack.c.l.b16 %v1719
        %v1870 = vunpack.c.h.b16 %v1719
        %v1871 = vunpack.c.l.b16 %v1720
        %v1872 = vunpack.c.h.b16 %v1720
        %v1873 = vunpack.c.l.b16 %v1721
        %v1874 = vunpack.c.h.b16 %v1721
        %v1875 = vunpack.c.l.b16 %v1722
        %v1876 = vunpack.c.h.b16 %v1722
        %v1877 = vunpack.c.l.b16 %v1723
        %v1878 = vunpack.c.h.b16 %v1723
        %v1879 = vunpack.c.l.b16 %v1724
        %v1880 = vunpack.c.h.b16 %v1724
        %v1881 = vunpack.c.l.b16 %v1725
        %v1882 = vunpack.c.h.b16 %v1725
        %v1883 = vunpack.c.l.b16 %v1726
        %v1884 = vunpack.c.h.b16 %v1726
        %v1885 = vunpack.c.l.b16 %v1727
        %v1886 = vunpack.c.h.b16 %v1727
        %v1887 = vunpack.c.l.b16 %v1728
        %v1888 = vunpack.c.h.b16 %v1728
        %v1889 = vunpack.c.l.b16 %v1729
        %v1890 = vunpack.c.h.b16 %v1729
        %v1891 = vunpack.c.l.b16 %v1730
        %v1892 = vunpack.c.h.b16 %v1730
        %v1893 = vunpack.c.l.b16 %v1731
        %v1894 = vunpack.c.h.b16 %v1731
        %v1895 = vunpack.c.l.b16 %v1732
        %v1896 = vunpack.c.h.b16 %v1732
        %v1897 = vunpack.c.l.b16 %v1733
        %v1898 = vunpack.c.h.b16 %v1733
        %v1899 = vunpack.c.l.b16 %v1734
        %v1900 = vunpack.c.h.b16 %v1734
        %v1901 = vunpack.c.l.b16 %v1735
        %v1902 = vunpack.c.h.b16 %v1735
        %v1903 = vunpack.c.l.b16 %v1736
        %v1904 = vunpack.c.h.b16 %v1736
        %v1905 = vunpack.c.l.b16 %v1737
        %v1906 = vunpack.c.h.b16 %v1737
        %v1907 = vunpack.c.l.b16 %v1738
        %v1908 = vunpack.c.h.b16 %v1738
        %v1909 = vunpack.c.l.b16 %v1739
        %v1910 = vunpack.c.h.b16 %v1739
        %v1911 = vunpack.c.l.b16 %v1740
        %v1912 = vunpack.c.h.b16 %v1740
        %v1913 = vunpack.c.l.b16 %v1741
        %v1914 = vunpack.c.h.b16 %v1741
        %v1915 = vunpack.c.l.b16 %v1742
        %v1916 = vunpack.c.h.b16 %v1742
        %v1917 = vunpack.c.l.b16 %v1743
        %v1918 = vunpack.c.h.b16 %v1743
        %v1919 = vunpack.c.l.b16 %v1744
        %v1920 = vunpack.c.h.b16 %v1744
        %v1921 = vpack.c.b16 %v1831, %v1825
        %v1922 = vpack.c.b16 %v1832, %v1826
        %v1923 = vpack.c.b16 %v1833, %v1827
        %v1924 = vpack.c.b16 %v1834, %v1828
        %v1925 = vpack.c.b16 %v1835, %v1829
        %v1926 = vpack.c.b16 %v1836, %v1830
        %v1927 = vpack.c.b16 %v1843, %v1837
        %v1928 = vpack.c.b16 %v1844, %v1838
        %v1929 = vpack.c.b16 %v1845, %v1839
        %v1930 = vpack.c.b16 %v1846, %v1840
        %v1931 = vpack.c.b16 %v1847, %v1841
        %v1932 = vpack.c.b16 %v1848, %v1842
        %v1933 = vpack.c.b16 %v1855, %v1849
        %v1934 = vpack.c.b16 %v1856, %v1850
        %v1935 = vpack.c.b16 %v1857, %v1851
        %v1936 = vpack.c.b16 %v1858, %v1852
        %v1937 = vpack.c.b16 %v1859, %v1853
        %v1938 = vpack.c.b16 %v1860, %v1854
        %v1939 = vpack.c.b16 %v1867, %v1861
        %v1940 = vpack.c.b16 %v1868, %v1862
        %v1941 = vpack.c.b16 %v1869, %v1863
        %v1942 = vpack.c.b16 %v1870, %v1864
        %v1943 = vpack.c.b16 %v1871, %v1865
        %v1944 = vpack.c.b16 %v1872, %v1866
        %v1945 = vpack.c.b16 %v1879, %v1873
        %v1946 = vpack.c.b16 %v1880, %v1874
        %v1947 = vpack.c.b16 %v1881, %v1875
        %v1948 = vpack.c.b16 %v1882, %v1876
        %v1949 = vpack.c.b16 %v1883, %v1877
        %v1950 = vpack.c.b16 %v1884, %v1878
        %v1951 = vpack.c.b16 %v1891, %v1885
        %v1952 = vpack.c.b16 %v1892, %v1886
        %v1953 = vpack.c.b16 %v1893, %v1887
        %v1954 = vpack.c.b16 %v1894, %v1888
        %v1955 = vpack.c.b16 %v1895, %v1889
        %v1956 = vpack.c.b16 %v1896, %v1890
        %v1957 = vpack.c.b16 %v1903, %v1897
        %v1958 = vpack.c.b16 %v1904, %v1898
        %v1959 = vpack.c.b16 %v1905, %v1899
        %v1960 = vpack.c.b16 %v1906, %v1900
        %v1961 = vpack.c.b16 %v1907, %v1901
        %v1962 = vpack.c.b16 %v1908, %v1902
        %v1963 = vpack.c.b16 %v1915, %v1909
        %v1964 = vpack.c.b16 %v1916, %v1910
        %v1965 = vpack.c.b16 %v1917, %v1911
        %v1966 = vpack.c.b16 %v1918, %v1912
        %v1967 = vpack.c.b16 %v1919, %v1913
        %v1968 = vpack.c.b16 %v1920, %v1914
        %2017 = vmatprep.subr.bf16.mxu0 %v1922
        %2018 = vmatpush1.bf16.msra.mxu0 %v1921
        %2019 = vmatprep.subr.bf16.mxu0 %v1928
        %2020 = vmatpush1.bf16.msra.mxu0 %v1927
        %2021 = vmatprep.subr.bf16.mxu0 %v1934
        %2022 = vmatpush1.bf16.msra.mxu0 %v1933
        %2023 = vmatprep.subr.bf16.mxu0 %v1940
        %2024 = vmatpush1.bf16.msra.mxu0 %v1939
        %2025 = vmatprep.subr.bf16.mxu0 %v1946
        %2026 = vmatpush1.bf16.msra.mxu0 %v1945
        %2027 = vmatprep.subr.bf16.mxu0 %v1952
        %2028 = vmatpush1.bf16.msra.mxu0 %v1951
        %2029 = vmatprep.subr.bf16.mxu0 %v1958
        %2030 = vmatpush1.bf16.msra.mxu0 %v1957
        %2031 = vmatprep.subr.bf16.mxu0 %v1964
        %2032 = vmatpush1.bf16.msra.mxu0 %v1963
        %2033 = vmatprep.subr.bf16.mxu0 0
        %2034 = vmatpush1.bf16.msra.mxu0 0
        %2035 = vmatprep.subr.bf16.mxu0 0
        %2036 = vmatpush1.bf16.msra.mxu0 0
        %2037 = vmatprep.subr.bf16.mxu0 0
        %2038 = vmatpush1.bf16.msra.mxu0 0
        %2039 = vmatprep.subr.bf16.mxu0 0
        %2040 = vmatpush1.bf16.msra.mxu0 0
        %2041 = vmatprep.subr.bf16.mxu0 0
        %2042 = vmatpush1.bf16.msra.mxu0 0
        %2043 = vmatprep.subr.bf16.mxu0 0
        %2044 = vmatpush1.bf16.msra.mxu0 0
        %2045 = vmatprep.subr.bf16.mxu0 0
        %2046 = vmatpush1.bf16.msra.mxu0 0
        %2047 = vmatprep.subr.bf16.mxu0 0
        %2048 = vmatpush1.bf16.msra.mxu0 0
        %2049 = vmatprep.mubr.bf16.mxu0 0
        %2050 = vmatmul.mubr.bf16.gmra.mrb[0].mxu0 %v1693
        %v2051 = vpop.f32.mrb[0].mxu0
        %v2052 = vadd.f32 %v1750, %v2051
        %v2053 = vpop.f32.mrb[0].mxu0
        %v2054 = vadd.f32 %v1754, %v2053
        %v2055 = vpop.f32.mrb[0].mxu0
        %v2056 = vadd.f32 %v1750, %v2055
        %v2057 = vpop.f32.mrb[0].mxu0
        %v2058 = vadd.f32 %v1754, %v2057
        %2059 = vmatprep.mubr.bf16.mxu0 0
        %2060 = vmatmul.mubr.bf16.gmra.mrb[0].mxu0 %v1694
        %v2061 = vpop.f32.mrb[0].mxu0
        %v2062 = vadd.f32 %v1750, %v2061
        %v2063 = vpop.f32.mrb[0].mxu0
        %v2064 = vadd.f32 %v1754, %v2063
        %v2065 = vpop.f32.mrb[0].mxu0
        %v2066 = vadd.f32 %v1750, %v2065
        %v2067 = vpop.f32.mrb[0].mxu0
        %v2068 = vadd.f32 %v1754, %v2067
        %2069 = vmatprep.mubr.bf16.mxu0 0
        %2070 = vmatmul.mubr.bf16.gmra.mrb[0].mxu0 %v1695
        %v2071 = vpop.f32.mrb[0].mxu0
        %v2072 = vadd.f32 %v1750, %v2071
        %v2073 = vpop.f32.mrb[0].mxu0
        %v2074 = vadd.f32 %v1754, %v2073
        %v2075 = vpop.f32.mrb[0].mxu0
        %v2076 = vadd.f32 %v1750, %v2075
        %v2077 = vpop.f32.mrb[0].mxu0
        %v2078 = vadd.f32 %v1754, %v2077
        %2079 = vmatprep.mubr.bf16.mxu0 0
        %2080 = vmatmul.mubr.bf16.gmra.mrb[0].mxu0 %v1696
        %v2081 = vpop.f32.mrb[0].mxu0
        %v2082 = vadd.f32 %v1750, %v2081
        %v2083 = vpop.f32.mrb[0].mxu0
        %v2084 = vadd.f32 %v1754, %v2083
        %v2085 = vpop.f32.mrb[0].mxu0
        %v2086 = vadd.f32 %v1750, %v2085
        %v2087 = vpop.f32.mrb[0].mxu0
        %v2088 = vadd.f32 %v1754, %v2087
        %2089 = vdwg.mxu0
        %2090 = vmatprep.subr.bf16.mxu0 %v1924
        %2091 = vmatpush1.bf16.msra.mxu0 %v1923
        %2092 = vmatprep.subr.bf16.mxu0 %v1930
        %2093 = vmatpush1.bf16.msra.mxu0 %v1929
        %2094 = vmatprep.subr.bf16.mxu0 %v1936
        %2095 = vmatpush1.bf16.msra.mxu0 %v1935
        %2096 = vmatprep.subr.bf16.mxu0 %v1942
        %2097 = vmatpush1.bf16.msra.mxu0 %v1941
        %2098 = vmatprep.subr.bf16.mxu0 %v1948
        %2099 = vmatpush1.bf16.msra.mxu0 %v1947
        %2100 = vmatprep.subr.bf16.mxu0 %v1954
        %2101 = vmatpush1.bf16.msra.mxu0 %v1953
        %2102 = vmatprep.subr.bf16.mxu0 %v1960
        %2103 = vmatpush1.bf16.msra.mxu0 %v1959
        %2104 = vmatprep.subr.bf16.mxu0 %v1966
        %2105 = vmatpush1.bf16.msra.mxu0 %v1965
        %2106 = vmatprep.subr.bf16.mxu0 0
        %2107 = vmatpush1.bf16.msra.mxu0 0
        %2108 = vmatprep.subr.bf16.mxu0 0
        %2109 = vmatpush1.bf16.msra.mxu0 0
        %2110 = vmatprep.subr.bf16.mxu0 0
        %2111 = vmatpush1.bf16.msra.mxu0 0
        %2112 = vmatprep.subr.bf16.mxu0 0
        %2113 = vmatpush1.bf16.msra.mxu0 0
        %2114 = vmatprep.subr.bf16.mxu0 0
        %2115 = vmatpush1.bf16.msra.mxu0 0
        %2116 = vmatprep.subr.bf16.mxu0 0
        %2117 = vmatpush1.bf16.msra.mxu0 0
        %2118 = vmatprep.subr.bf16.mxu0 0
        %2119 = vmatpush1.bf16.msra.mxu0 0
        %2120 = vmatprep.subr.bf16.mxu0 0
        %2121 = vmatpush1.bf16.msra.mxu0 0
        %2122 = vmatprep.mubr.bf16.mxu0 0
        %2123 = vmatmul.mubr.bf16.gmra.mrb[0].mxu0 %v1693
        %v2124 = vpop.f32.mrb[0].mxu0
        %v2125 = vadd.f32 %v1758, %v2124
        %v2126 = vpop.f32.mrb[0].mxu0
        %v2127 = vadd.f32 %v1762, %v2126
        %v2128 = vpop.f32.mrb[0].mxu0
        %v2129 = vadd.f32 %v1758, %v2128
        %v2130 = vpop.f32.mrb[0].mxu0
        %v2131 = vadd.f32 %v1762, %v2130
        %2132 = vmatprep.mubr.bf16.mxu0 0
        %2133 = vmatmul.mubr.bf16.gmra.mrb[0].mxu0 %v1694
        %v2134 = vpop.f32.mrb[0].mxu0
        %v2135 = vadd.f32 %v1758, %v2134
        %v2136 = vpop.f32.mrb[0].mxu0
        %v2137 = vadd.f32 %v1762, %v2136
        %v2138 = vpop.f32.mrb[0].mxu0
        %v2139 = vadd.f32 %v1758, %v2138
        %v2140 = vpop.f32.mrb[0].mxu0
        %v2141 = vadd.f32 %v1762, %v2140
        %2142 = vmatprep.mubr.bf16.mxu0 0
        %2143 = vmatmul.mubr.bf16.gmra.mrb[0].mxu0 %v1695
        %v2144 = vpop.f32.mrb[0].mxu0
        %v2145 = vadd.f32 %v1758, %v2144
        %v2146 = vpop.f32.mrb[0].mxu0
        %v2147 = vadd.f32 %v1762, %v2146
        %v2148 = vpop.f32.mrb[0].mxu0
        %v2149 = vadd.f32 %v1758, %v2148
        %v2150 = vpop.f32.mrb[0].mxu0
        %v2151 = vadd.f32 %v1762, %v2150
        %2152 = vmatprep.mubr.bf16.mxu0 0
        %2153 = vmatmul.mubr.bf16.gmra.mrb[0].mxu0 %v1696
        %v2154 = vpop.f32.mrb[0].mxu0
        %v2155 = vadd.f32 %v1758, %v2154
        %v2156 = vpop.f32.mrb[0].mxu0
        %v2157 = vadd.f32 %v1762, %v2156
        %v2158 = vpop.f32.mrb[0].mxu0
        %v2159 = vadd.f32 %v1758, %v2158
        %v2160 = vpop.f32.mrb[0].mxu0
        %v2161 = vadd.f32 %v1762, %v2160
        %2162 = vdwg.mxu0
        %2163 = vmatprep.subr.bf16.mxu0 %v1926
        %2164 = vmatpush1.bf16.msra.mxu0 %v1925
        %2165 = vmatprep.subr.bf16.mxu0 %v1932
        %2166 = vmatpush1.bf16.msra.mxu0 %v1931
        %2167 = vmatprep.subr.bf16.mxu0 %v1938
        %2168 = vmatpush1.bf16.msra.mxu0 %v1937
        %2169 = vmatprep.subr.bf16.mxu0 %v1944
        %2170 = vmatpush1.bf16.msra.mxu0 %v1943
        %2171 = vmatprep.subr.bf16.mxu0 %v1950
        %2172 = vmatpush1.bf16.msra.mxu0 %v1949
        %2173 = vmatprep.subr.bf16.mxu0 %v1956
        %2174 = vmatpush1.bf16.msra.mxu0 %v1955
        %2175 = vmatprep.subr.bf16.mxu0 %v1962
        %2176 = vmatpush1.bf16.msra.mxu0 %v1961
        %2177 = vmatprep.subr.bf16.mxu0 %v1968
        %2178 = vmatpush1.bf16.msra.mxu0 %v1967
        %2179 = vmatprep.subr.bf16.mxu0 0
        %2180 = vmatpush1.bf16.msra.mxu0 0
        %2181 = vmatprep.subr.bf16.mxu0 0
        %2182 = vmatpush1.bf16.msra.mxu0 0
        %2183 = vmatprep.subr.bf16.mxu0 0
        %2184 = vmatpush1.bf16.msra.mxu0 0
        %2185 = vmatprep.subr.bf16.mxu0 0
        %2186 = vmatpush1.bf16.msra.mxu0 0
        %2187 = vmatprep.subr.bf16.mxu0 0
        %2188 = vmatpush1.bf16.msra.mxu0 0
        %2189 = vmatprep.subr.bf16.mxu0 0
        %2190 = vmatpush1.bf16.msra.mxu0 0
        %2191 = vmatprep.subr.bf16.mxu0 0
        %2192 = vmatpush1.bf16.msra.mxu0 0
        %2193 = vmatprep.subr.bf16.mxu0 0
        %2194 = vmatpush1.bf16.msra.mxu0 0
        %2195 = vmatprep.mubr.bf16.mxu0 0
        %2196 = vmatmul.mubr.bf16.gmra.mrb[0].mxu0 %v1693
        %v2197 = vpop.f32.mrb[0].mxu0
        %v2198 = vadd.f32 %v1766, %v2197
        %v2199 = vpop.f32.mrb[0].mxu0
        %v2200 = vadd.f32 %v1770, %v2199
        %v2201 = vpop.f32.mrb[0].mxu0
        %v2202 = vadd.f32 %v1766, %v2201
        %v2203 = vpop.f32.mrb[0].mxu0
        %v2204 = vadd.f32 %v1770, %v2203
        %2205 = vmatprep.mubr.bf16.mxu0 0
        %2206 = vmatmul.mubr.bf16.gmra.mrb[0].mxu0 %v1694
        %v2207 = vpop.f32.mrb[0].mxu0
        %v2208 = vadd.f32 %v1766, %v2207
        %v2209 = vpop.f32.mrb[0].mxu0
        %v2210 = vadd.f32 %v1770, %v2209
        %v2211 = vpop.f32.mrb[0].mxu0
        %v2212 = vadd.f32 %v1766, %v2211
        %v2213 = vpop.f32.mrb[0].mxu0
        %v2214 = vadd.f32 %v1770, %v2213
        %2215 = vmatprep.mubr.bf16.mxu0 0
        %2216 = vmatmul.mubr.bf16.gmra.mrb[0].mxu0 %v1695
        %v2217 = vpop.f32.mrb[0].mxu0
        %v2218 = vadd.f32 %v1766, %v2217
        %v2219 = vpop.f32.mrb[0].mxu0
        %v2220 = vadd.f32 %v1770, %v2219
        %v2221 = vpop.f32.mrb[0].mxu0
        %v2222 = vadd.f32 %v1766, %v2221
        %v2223 = vpop.f32.mrb[0].mxu0
        %v2224 = vadd.f32 %v1770, %v2223
        %2225 = vmatprep.mubr.bf16.mxu0 0
        %2226 = vmatmul.mubr.bf16.gmra.mrb[0].mxu0 %v1696
        %v2227 = vpop.f32.mrb[0].mxu0
        %v2228 = vadd.f32 %v1766, %v2227
        %v2229 = vpop.f32.mrb[0].mxu0
        %v2230 = vadd.f32 %v1770, %v2229
        %v2231 = vpop.f32.mrb[0].mxu0
        %v2232 = vadd.f32 %v1766, %v2231
        %v2233 = vpop.f32.mrb[0].mxu0
        %v2234 = vadd.f32 %v1770, %v2233
        %2235 = vdwg.mxu0
        %v2236 = vsub.f32 0.0, %v2052
        %v2237 = vsub.f32 0.0, %v2054
        %v2238 = vsub.f32 0.0, %v2125
        %v2239 = vsub.f32 0.0, %v2127
        %v2240 = vsub.f32 0.0, %v2198
        %v2241 = vsub.f32 0.0, %v2200
        %v2242 = vsub.f32 0.0, %v2056
        %v2243 = vsub.f32 0.0, %v2058
        %v2244 = vsub.f32 0.0, %v2129
        %v2245 = vsub.f32 0.0, %v2131
        %v2246 = vsub.f32 0.0, %v2202
        %v2247 = vsub.f32 0.0, %v2204
        %v2248 = vsub.f32 0.0, %v2062
        %v2249 = vsub.f32 0.0, %v2064
        %v2250 = vsub.f32 0.0, %v2135
        %v2251 = vsub.f32 0.0, %v2137
        %v2252 = vsub.f32 0.0, %v2208
        %v2253 = vsub.f32 0.0, %v2210
        %v2254 = vsub.f32 0.0, %v2066
        %v2255 = vsub.f32 0.0, %v2068
        %v2256 = vsub.f32 0.0, %v2139
        %v2257 = vsub.f32 0.0, %v2141
        %v2258 = vsub.f32 0.0, %v2212
        %v2259 = vsub.f32 0.0, %v2214
        %v2260 = vsub.f32 0.0, %v2072
        %v2261 = vsub.f32 0.0, %v2074
        %v2262 = vsub.f32 0.0, %v2145
        %v2263 = vsub.f32 0.0, %v2147
        %v2264 = vsub.f32 0.0, %v2218
        %v2265 = vsub.f32 0.0, %v2220
        %v2266 = vsub.f32 0.0, %v2076
        %v2267 = vsub.f32 0.0, %v2078
        %v2268 = vsub.f32 0.0, %v2149
        %v2269 = vsub.f32 0.0, %v2151
        %v2270 = vsub.f32 0.0, %v2222
        %v2271 = vsub.f32 0.0, %v2224
        %v2272 = vsub.f32 0.0, %v2082
        %v2273 = vsub.f32 0.0, %v2084
        %v2274 = vsub.f32 0.0, %v2155
        %v2275 = vsub.f32 0.0, %v2157
        %v2276 = vsub.f32 0.0, %v2228
        %v2277 = vsub.f32 0.0, %v2230
        %v2278 = vsub.f32 0.0, %v2086
        %v2279 = vsub.f32 0.0, %v2088
        %v2280 = vsub.f32 0.0, %v2159
        %v2281 = vsub.f32 0.0, %v2161
        %v2282 = vsub.f32 0.0, %v2232
        %v2283 = vsub.f32 0.0, %v2234
        %v2284 = vmul.f32 %v2236, 1.442695
        %v2285 = vpow.pop %v2284
        %v2286 = vmul.f32 %v2237, 1.442695
        %v2287 = vpow.pop %v2286
        %v2288 = vmul.f32 %v2238, 1.442695
        %v2289 = vpow.pop %v2288
        %v2290 = vmul.f32 %v2239, 1.442695
        %v2291 = vpow.pop %v2290
        %v2292 = vmul.f32 %v2240, 1.442695
        %v2293 = vpow.pop %v2292
        %v2294 = vmul.f32 %v2241, 1.442695
        %v2295 = vpow.pop %v2294
        %v2296 = vmul.f32 %v2242, 1.442695
        %v2297 = vpow.pop %v2296
        %v2298 = vmul.f32 %v2243, 1.442695
        %v2299 = vpow.pop %v2298
        %v2300 = vmul.f32 %v2244, 1.442695
        %v2301 = vpow.pop %v2300
        %v2302 = vmul.f32 %v2245, 1.442695
        %v2303 = vpow.pop %v2302
        %v2304 = vmul.f32 %v2246, 1.442695
        %v2305 = vpow.pop %v2304
        %v2306 = vmul.f32 %v2247, 1.442695
        %v2307 = vpow.pop %v2306
        %v2308 = vmul.f32 %v2248, 1.442695
        %v2309 = vpow.pop %v2308
        %v2310 = vmul.f32 %v2249, 1.442695
        %v2311 = vpow.pop %v2310
        %v2312 = vmul.f32 %v2250, 1.442695
        %v2313 = vpow.pop %v2312
        %v2314 = vmul.f32 %v2251, 1.442695
        %v2315 = vpow.pop %v2314
        %v2316 = vmul.f32 %v2252, 1.442695
        %v2317 = vpow.pop %v2316
        %v2318 = vmul.f32 %v2253, 1.442695
        %v2319 = vpow.pop %v2318
        %v2320 = vmul.f32 %v2254, 1.442695
        %v2321 = vpow.pop %v2320
        %v2322 = vmul.f32 %v2255, 1.442695
        %v2323 = vpow.pop %v2322
        %v2324 = vmul.f32 %v2256, 1.442695
        %v2325 = vpow.pop %v2324
        %v2326 = vmul.f32 %v2257, 1.442695
        %v2327 = vpow.pop %v2326
        %v2328 = vmul.f32 %v2258, 1.442695
        %v2329 = vpow.pop %v2328
        %v2330 = vmul.f32 %v2259, 1.442695
        %v2331 = vpow.pop %v2330
        %v2332 = vmul.f32 %v2260, 1.442695
        %v2333 = vpow.pop %v2332
        %v2334 = vmul.f32 %v2261, 1.442695
        %v2335 = vpow.pop %v2334
        %v2336 = vmul.f32 %v2262, 1.442695
        %v2337 = vpow.pop %v2336
        %v2338 = vmul.f32 %v2263, 1.442695
        %v2339 = vpow.pop %v2338
        %v2340 = vmul.f32 %v2264, 1.442695
        %v2341 = vpow.pop %v2340
        %v2342 = vmul.f32 %v2265, 1.442695
        %v2343 = vpow.pop %v2342
        %v2344 = vmul.f32 %v2266, 1.442695
        %v2345 = vpow.pop %v2344
        %v2346 = vmul.f32 %v2267, 1.442695
        %v2347 = vpow.pop %v2346
        %v2348 = vmul.f32 %v2268, 1.442695
        %v2349 = vpow.pop %v2348
        %v2350 = vmul.f32 %v2269, 1.442695
        %v2351 = vpow.pop %v2350
        %v2352 = vmul.f32 %v2270, 1.442695
        %v2353 = vpow.pop %v2352
        %v2354 = vmul.f32 %v2271, 1.442695
        %v2355 = vpow.pop %v2354
        %v2356 = vmul.f32 %v2272, 1.442695
        %v2357 = vpow.pop %v2356
        %v2358 = vmul.f32 %v2273, 1.442695
        %v2359 = vpow.pop %v2358
        %v2360 = vmul.f32 %v2274, 1.442695
        %v2361 = vpow.pop %v2360
        %v2362 = vmul.f32 %v2275, 1.442695
        %v2363 = vpow.pop %v2362
        %v2364 = vmul.f32 %v2276, 1.442695
        %v2365 = vpow.pop %v2364
        %v2366 = vmul.f32 %v2277, 1.442695
        %v2367 = vpow.pop %v2366
        %v2368 = vmul.f32 %v2278, 1.442695
        %v2369 = vpow.pop %v2368
        %v2370 = vmul.f32 %v2279, 1.442695
        %v2371 = vpow.pop %v2370
        %v2372 = vmul.f32 %v2280, 1.442695
        %v2373 = vpow.pop %v2372
        %v2374 = vmul.f32 %v2281, 1.442695
        %v2375 = vpow.pop %v2374
        %v2376 = vmul.f32 %v2282, 1.442695
        %v2377 = vpow.pop %v2376
        %v2378 = vmul.f32 %v2283, 1.442695
        %v2379 = vpow.pop %v2378
        %v2380 = vadd.f32 %v2285, 1.0
        %v2381 = vadd.f32 %v2287, 1.0
        %v2382 = vadd.f32 %v2289, 1.0
        %v2383 = vadd.f32 %v2291, 1.0
        %v2384 = vadd.f32 %v2293, 1.0
        %v2385 = vadd.f32 %v2295, 1.0
        %v2386 = vadd.f32 %v2297, 1.0
        %v2387 = vadd.f32 %v2299, 1.0
        %v2388 = vadd.f32 %v2301, 1.0
        %v2389 = vadd.f32 %v2303, 1.0
        %v2390 = vadd.f32 %v2305, 1.0
        %v2391 = vadd.f32 %v2307, 1.0
        %v2392 = vadd.f32 %v2309, 1.0
        %v2393 = vadd.f32 %v2311, 1.0
        %v2394 = vadd.f32 %v2313, 1.0
        %v2395 = vadd.f32 %v2315, 1.0
        %v2396 = vadd.f32 %v2317, 1.0
        %v2397 = vadd.f32 %v2319, 1.0
        %v2398 = vadd.f32 %v2321, 1.0
        %v2399 = vadd.f32 %v2323, 1.0
        %v2400 = vadd.f32 %v2325, 1.0
        %v2401 = vadd.f32 %v2327, 1.0
        %v2402 = vadd.f32 %v2329, 1.0
        %v2403 = vadd.f32 %v2331, 1.0
        %v2404 = vadd.f32 %v2333, 1.0
        %v2405 = vadd.f32 %v2335, 1.0
        %v2406 = vadd.f32 %v2337, 1.0
        %v2407 = vadd.f32 %v2339, 1.0
        %v2408 = vadd.f32 %v2341, 1.0
        %v2409 = vadd.f32 %v2343, 1.0
        %v2410 = vadd.f32 %v2345, 1.0
        %v2411 = vadd.f32 %v2347, 1.0
        %v2412 = vadd.f32 %v2349, 1.0
        %v2413 = vadd.f32 %v2351, 1.0
        %v2414 = vadd.f32 %v2353, 1.0
        %v2415 = vadd.f32 %v2355, 1.0
        %v2416 = vadd.f32 %v2357, 1.0
        %v2417 = vadd.f32 %v2359, 1.0
        %v2418 = vadd.f32 %v2361, 1.0
        %v2419 = vadd.f32 %v2363, 1.0
        %v2420 = vadd.f32 %v2365, 1.0
        %v2421 = vadd.f32 %v2367, 1.0
        %v2422 = vadd.f32 %v2369, 1.0
        %v2423 = vadd.f32 %v2371, 1.0
        %v2424 = vadd.f32 %v2373, 1.0
        %v2425 = vadd.f32 %v2375, 1.0
        %v2426 = vadd.f32 %v2377, 1.0
        %v2427 = vadd.f32 %v2379, 1.0
        %v2428 = vrcp.pop %v2380
        %v2429 = vrcp.pop %v2381
        %v2430 = vrcp.pop %v2382
        %v2431 = vrcp.pop %v2383
        %v2432 = vrcp.pop %v2384
        %v2433 = vrcp.pop %v2385
        %v2434 = vrcp.pop %v2386
        %v2435 = vrcp.pop %v2387
        %v2436 = vrcp.pop %v2388
        %v2437 = vrcp.pop %v2389
        %v2438 = vrcp.pop %v2390
        %v2439 = vrcp.pop %v2391
        %v2440 = vrcp.pop %v2392
        %v2441 = vrcp.pop %v2393
        %v2442 = vrcp.pop %v2394
        %v2443 = vrcp.pop %v2395
        %v2444 = vrcp.pop %v2396
        %v2445 = vrcp.pop %v2397
        %v2446 = vrcp.pop %v2398
        %v2447 = vrcp.pop %v2399
        %v2448 = vrcp.pop %v2400
        %v2449 = vrcp.pop %v2401
        %v2450 = vrcp.pop %v2402
        %v2451 = vrcp.pop %v2403
        %v2452 = vrcp.pop %v2404
        %v2453 = vrcp.pop %v2405
        %v2454 = vrcp.pop %v2406
        %v2455 = vrcp.pop %v2407
        %v2456 = vrcp.pop %v2408
        %v2457 = vrcp.pop %v2409
        %v2458 = vrcp.pop %v2410
        %v2459 = vrcp.pop %v2411
        %v2460 = vrcp.pop %v2412
        %v2461 = vrcp.pop %v2413
        %v2462 = vrcp.pop %v2414
        %v2463 = vrcp.pop %v2415
        %v2464 = vrcp.pop %v2416
        %v2465 = vrcp.pop %v2417
        %v2466 = vrcp.pop %v2418
        %v2467 = vrcp.pop %v2419
        %v2468 = vrcp.pop %v2420
        %v2469 = vrcp.pop %v2421
        %v2470 = vrcp.pop %v2422
        %v2471 = vrcp.pop %v2423
        %v2472 = vrcp.pop %v2424
        %v2473 = vrcp.pop %v2425
        %v2474 = vrcp.pop %v2426
        %v2475 = vrcp.pop %v2427
        %v2476 = vpack.c.bf16 %v2434, %v2428
        %v2477 = vpack.c.bf16 %v2435, %v2429
        %v2478 = vpack.c.bf16 %v2436, %v2430
        %v2479 = vpack.c.bf16 %v2437, %v2431
        %v2480 = vpack.c.bf16 %v2438, %v2432
        %v2481 = vpack.c.bf16 %v2439, %v2433
        %v2482 = vpack.c.bf16 %v2446, %v2440
        %v2483 = vpack.c.bf16 %v2447, %v2441
        %v2484 = vpack.c.bf16 %v2448, %v2442
        %v2485 = vpack.c.bf16 %v2449, %v2443
        %v2486 = vpack.c.bf16 %v2450, %v2444
        %v2487 = vpack.c.bf16 %v2451, %v2445
        %v2488 = vpack.c.bf16 %v2458, %v2452
        %v2489 = vpack.c.bf16 %v2459, %v2453
        %v2490 = vpack.c.bf16 %v2460, %v2454
        %v2491 = vpack.c.bf16 %v2461, %v2455
        %v2492 = vpack.c.bf16 %v2462, %v2456
        %v2493 = vpack.c.bf16 %v2463, %v2457
        %v2494 = vpack.c.bf16 %v2470, %v2464
        %v2495 = vpack.c.bf16 %v2471, %v2465
        %v2496 = vpack.c.bf16 %v2472, %v2466
        %v2497 = vpack.c.bf16 %v2473, %v2467
        %v2498 = vpack.c.bf16 %v2474, %v2468
        %v2499 = vpack.c.bf16 %v2475, %v2469
        %v2524 = vunpack.c.l.b16 %v2476
        %v2525 = vunpack.c.l.b16 %v2477
        %v2526 = vunpack.c.l.b16 %v2478
        %v2527 = vunpack.c.l.b16 %v2479
        %v2528 = vunpack.c.l.b16 %v2480
        %v2529 = vunpack.c.l.b16 %v2481
        %v2530 = vunpack.c.h.b16 %v2476
        %v2531 = vunpack.c.h.b16 %v2477
        %v2532 = vunpack.c.h.b16 %v2478
        %v2533 = vunpack.c.h.b16 %v2479
        %v2534 = vunpack.c.h.b16 %v2480
        %v2535 = vunpack.c.h.b16 %v2481
        %v2536 = vunpack.c.l.b16 %v2482
        %v2537 = vunpack.c.l.b16 %v2483
        %v2538 = vunpack.c.l.b16 %v2484
        %v2539 = vunpack.c.l.b16 %v2485
        %v2540 = vunpack.c.l.b16 %v2486
        %v2541 = vunpack.c.l.b16 %v2487
        %v2542 = vunpack.c.h.b16 %v2482
        %v2543 = vunpack.c.h.b16 %v2483
        %v2544 = vunpack.c.h.b16 %v2484
        %v2545 = vunpack.c.h.b16 %v2485
        %v2546 = vunpack.c.h.b16 %v2486
        %v2547 = vunpack.c.h.b16 %v2487
        %v2548 = vunpack.c.l.b16 %v2488
        %v2549 = vunpack.c.l.b16 %v2489
        %v2550 = vunpack.c.l.b16 %v2490
        %v2551 = vunpack.c.l.b16 %v2491
        %v2552 = vunpack.c.l.b16 %v2492
        %v2553 = vunpack.c.l.b16 %v2493
        %v2554 = vunpack.c.h.b16 %v2488
        %v2555 = vunpack.c.h.b16 %v2489
        %v2556 = vunpack.c.h.b16 %v2490
        %v2557 = vunpack.c.h.b16 %v2491
        %v2558 = vunpack.c.h.b16 %v2492
        %v2559 = vunpack.c.h.b16 %v2493
        %v2560 = vunpack.c.l.b16 %v2494
        %v2561 = vunpack.c.l.b16 %v2495
        %v2562 = vunpack.c.l.b16 %v2496
        %v2563 = vunpack.c.l.b16 %v2497
        %v2564 = vunpack.c.l.b16 %v2498
        %v2565 = vunpack.c.l.b16 %v2499
        %v2566 = vunpack.c.h.b16 %v2494
        %v2567 = vunpack.c.h.b16 %v2495
        %v2568 = vunpack.c.h.b16 %v2496
        %v2569 = vunpack.c.h.b16 %v2497
        %v2570 = vunpack.c.h.b16 %v2498
        %v2571 = vunpack.c.h.b16 %v2499
        %v2572 = vpack.c.b16 %v2525, %v2524
        %v2573 = vpack.c.b16 %v2527, %v2526
        %v2574 = vpack.c.b16 %v2529, %v2528
        %v2575 = vpack.c.b16 %v2531, %v2530
        %v2576 = vpack.c.b16 %v2533, %v2532
        %v2577 = vpack.c.b16 %v2535, %v2534
        %v2578 = vpack.c.b16 %v2537, %v2536
        %v2579 = vpack.c.b16 %v2539, %v2538
        %v2580 = vpack.c.b16 %v2541, %v2540
        %v2581 = vpack.c.b16 %v2543, %v2542
        %v2582 = vpack.c.b16 %v2545, %v2544
        %v2583 = vpack.c.b16 %v2547, %v2546
        %v2584 = vpack.c.b16 %v2549, %v2548
        %v2585 = vpack.c.b16 %v2551, %v2550
        %v2586 = vpack.c.b16 %v2553, %v2552
        %v2587 = vpack.c.b16 %v2555, %v2554
        %v2588 = vpack.c.b16 %v2557, %v2556
        %v2589 = vpack.c.b16 %v2559, %v2558
        %v2590 = vpack.c.b16 %v2561, %v2560
        %v2591 = vpack.c.b16 %v2563, %v2562
        %v2592 = vpack.c.b16 %v2565, %v2564
        %v2593 = vpack.c.b16 %v2567, %v2566
        %v2594 = vpack.c.b16 %v2569, %v2568
        %v2595 = vpack.c.b16 %v2571, %v2570
        %2620 = vst [vmem:[%s485] sm:$0xff] %v2572
        %2621 = vst [vmem:[%s485 + $0x8] sm:$0xff] %v2573
        %vm2622 = vcmask 1043456
        %vm2623 = vcmask 752644
        %vm2624 = vmor %vm2623, %vm2622
        %2625 = vst.msk [vmem:[%s485 + $0x10] sm:$0xff] %vm2624, %v2574
        %2626 = vst [vmem:[%s485 + $0x18] sm:$0xff] %v2575
        %2627 = vst [vmem:[%s485 + $0x20] sm:$0xff] %v2576
        %2628 = vst.msk [vmem:[%s485 + $0x28] sm:$0xff] %vm2624, %v2577
        %2629 = vst [vmem:[%s485 + $0x30] sm:$0xff] %v2578
        %2630 = vst [vmem:[%s485 + $0x38] sm:$0xff] %v2579
        %2631 = vst.msk [vmem:[%s485 + $0x40] sm:$0xff] %vm2624, %v2580
        %2632 = vst [vmem:[%s485 + $0x48] sm:$0xff] %v2581
        %2633 = vst [vmem:[%s485 + $0x50] sm:$0xff] %v2582
        %2634 = vst.msk [vmem:[%s485 + $0x58] sm:$0xff] %vm2624, %v2583
        %2635 = vst [vmem:[%s485 + $0x60] sm:$0xff] %v2584
        %2636 = vst [vmem:[%s485 + $0x68] sm:$0xff] %v2585
        %2637 = vst.msk [vmem:[%s485 + $0x70] sm:$0xff] %vm2624, %v2586
        %2638 = vst [vmem:[%s485 + $0x78] sm:$0xff] %v2587
        %2639 = vst [vmem:[%s485 + $0x80] sm:$0xff] %v2588
        %2640 = vst.msk [vmem:[%s485 + $0x88] sm:$0xff] %vm2624, %v2589
        %2641 = vst [vmem:[%s485 + $0x90] sm:$0xff] %v2590
        %2642 = vst [vmem:[%s485 + $0x98] sm:$0xff] %v2591
        %2643 = vst.msk [vmem:[%s485 + $0xa0] sm:$0xff] %vm2624, %v2592
        %2644 = vst [vmem:[%s485 + $0xa8] sm:$0xff] %v2593
        %2645 = vst [vmem:[%s485 + $0xb0] sm:$0xff] %v2594
        %2646 = vst.msk [vmem:[%s485 + $0xb8] sm:$0xff] %vm2624, %v2595
        %s2647 = sand.u32 %s315, 1
        %s2648 = sand.u32 %s315, 1
        %s2649 = smul.addr %s2648, 64
        %s2650 = scalar_lea.vmem [#allocation2], %s2649
        %s2651 = sand.u32 %s341, 1
        %s2652 = scalar_lea.sflag [#allocation4], %s2651
        %s2653 = sand.u32 %s341, 1
        %s2654 = smul.addr %s2653, 192
        %s2655 = scalar_lea.vmem [#allocation3], %s2654
        // Predicated region
        $region73: #{autoencoder_forward.1} parent=71 // pred_check
          %p2656 = pneg %p325
        $region74: #{autoencoder_forward.1} parent=71 // pred_check_branch
          %2658 = sbr.rel (%p2656) target = $region76
        $region75: #{autoencoder_forward.1} parent=71 // pred_region
          %s2659 = smul.u32 8, %s29
          %s2660 = ssub.s32 25, %s2659
          %p2661 = scmp.lt.s32.totalorder %s2660, 8
          %s2662 = scalar_select %p2661, %s2660, 8
          %s2663 = smul.u32 128, %s2662
          %p2664 = scmp.ne.s32.totalorder 0, %s2663
          %s2665 = smul.addr %s2659, 8
          %s2666 = scalar_lea.vmem %s13, %s2665
          // Predicated region
          $region77: #{autoencoder_forward.1} parent=75 // pred_check
            %p2667 = pneg %p2664
          $region78: #{autoencoder_forward.1} parent=75 // pred_check_branch
            %2669 = sbr.rel (%p2667) target = $region80
          $region79: #{autoencoder_forward.1} parent=75 // pred_region
            // Predicated region
            $region81: #{autoencoder_forward.1} parent=79 // pred_check
              _
            $region82: #{autoencoder_forward.1} parent=79 // pred_check_branch
              %2671 = sbr.rel (0) target = $region84
            $region83: #{autoencoder_forward.1} parent=79 // pred_region
              // Predicated region
              $region103: #{autoencoder_forward.1} parent=83 // pred_check
                _
              $region104: #{autoencoder_forward.1} parent=83 // pred_check_branch
                %2734 = sbr.rel (0) target = $region106
              $region105: #{autoencoder_forward.1} parent=83 // pred_region
                %s2735 = sshrl.u32 %s2662, 3
                // While loop
                $region107: #{autoencoder_forward.1} parent=105 // loop_pre_header
                  _
                $region108: #{autoencoder_forward.1} parent=105 // loop_header
                  %s2737 = sphi 0, %s2739
                  %p2738 = scmp.ge.s32.totalorder %s2737, %s2735
                  %s2742 = sphi 0, %s2763
                  %s2743 = sphi %s2650, %s2766
                  %s2744 = sphi %s2666, %s2767
                $region109: #{autoencoder_forward.1} parent=105 // loop_header_branch
                  %2741 = sbr.rel (%p2738) target = $region113
                $region110: #{autoencoder_forward.1} parent=105 // loop_body
                  %v2745 = vld [vmem:[%s2743] sm:$0xff]
                  %2746 = vst [vmem:[%s2744] sm:$0xff] %v2745
                  %v2747 = vld [vmem:[%s2743 + $0x8] sm:$0xff]
                  %2748 = vst [vmem:[%s2744 + $0x8] sm:$0xff] %v2747
                  %v2749 = vld [vmem:[%s2743 + $0x10] sm:$0xff]
                  %2750 = vst [vmem:[%s2744 + $0x10] sm:$0xff] %v2749
                  %v2751 = vld [vmem:[%s2743 + $0x18] sm:$0xff]
                  %2752 = vst [vmem:[%s2744 + $0x18] sm:$0xff] %v2751
                  %v2753 = vld [vmem:[%s2743 + $0x20] sm:$0xff]
                  %2754 = vst [vmem:[%s2744 + $0x20] sm:$0xff] %v2753
                  %v2755 = vld [vmem:[%s2743 + $0x28] sm:$0xff]
                  %2756 = vst [vmem:[%s2744 + $0x28] sm:$0xff] %v2755
                  %v2757 = vld [vmem:[%s2743 + $0x30] sm:$0xff]
                  %2758 = vst [vmem:[%s2744 + $0x30] sm:$0xff] %v2757
                  %v2759 = vld [vmem:[%s2743 + $0x38] sm:$0xff]
                  %2760 = vst [vmem:[%s2744 + $0x38] sm:$0xff] %v2759
                  %s2761 = sadd.s32 1, %s2742
                  %p2762 = scmp.ge.s32.totalorder %s2761, %s2735
                  %s2763 = scalar_select %p2762, 0, %s2761
                  %s2764 = smul.u32 %s2763, 64
                  %s2765 = smul.u32 %s2763, 64
                  %s2766 = scalar_lea.vmem %s2650, %s2764 [#allocation2]
                  %s2767 = scalar_lea.vmem %s2666, %s2765
                $region111: #{autoencoder_forward.1} parent=105 // loop_footer
                  %s2739 = sadd.s32 %s2737, 1
                $region112: #{autoencoder_forward.1} parent=105 // loop_footer_branch
                  %2736 = sbr.rel target = $region108
                $region113: #{autoencoder_forward.1} parent=105 // loop_exit
                  _
                %s2768 = sshrl.u32 %s2662, 3
                %s2769 = sand.u32 %s2662, 7
                %s2770 = smul.u32 %s2768, 8
                %s2771 = smul.u32 8, %s2770
                %s2772 = scalar_lea.vmem %s2650, %s2771 [#allocation2]
                %s2773 = smul.u32 8, %s2770
                %s2774 = scalar_lea.vmem %s2666, %s2773
                // While loop
                $region114: #{autoencoder_forward.1} parent=105 // loop_pre_header
                  _
                $region115: #{autoencoder_forward.1} parent=105 // loop_header
                  %s2776 = sphi 0, %s2778
                  %p2777 = scmp.ge.s32.totalorder %s2776, %s2769
                  %s2781 = sphi 0, %s2788
                  %s2782 = sphi %s2772, %s2791
                  %s2783 = sphi %s2774, %s2792
                $region116: #{autoencoder_forward.1} parent=105 // loop_header_branch
                  %2780 = sbr.rel (%p2777) target = $region120
                $region117: #{autoencoder_forward.1} parent=105 // loop_body
                  %v2784 = vld [vmem:[%s2782] sm:$0xff]
                  %2785 = vst [vmem:[%s2783] sm:$0xff] %v2784
                  %s2786 = sadd.s32 1, %s2781
                  %p2787 = scmp.ge.s32.totalorder %s2786, %s2769
                  %s2788 = scalar_select %p2787, 0, %s2786
                  %s2789 = smul.u32 %s2788, 8
                  %s2790 = smul.u32 %s2788, 8
                  %s2791 = scalar_lea.vmem %s2772, %s2789 [#allocation2]
                  %s2792 = scalar_lea.vmem %s2774, %s2790
                $region118: #{autoencoder_forward.1} parent=105 // loop_footer
                  %s2778 = sadd.s32 %s2776, 1
                $region119: #{autoencoder_forward.1} parent=105 // loop_footer_branch
                  %2775 = sbr.rel target = $region115
                $region120: #{autoencoder_forward.1} parent=105 // loop_exit
                  _
              $region106: #{autoencoder_forward.1} parent=83 // pred_fallthru
                _
              // Predicated region
              $region121: #{autoencoder_forward.1} parent=83 // pred_check
                _
              $region122: #{autoencoder_forward.1} parent=83 // pred_check_branch
                %2794 = sbr.rel target = $region124
              $region123: #{autoencoder_forward.1} parent=83 // pred_region
                _
              $region124: #{autoencoder_forward.1} parent=83 // pred_fallthru
                _
            $region84: #{autoencoder_forward.1} parent=79 // pred_fallthru
              _
            // Predicated region
            $region85: #{autoencoder_forward.1} parent=79 // pred_check
              _
            $region86: #{autoencoder_forward.1} parent=79 // pred_check_branch
              %2673 = sbr.rel target = $region88
            $region87: #{autoencoder_forward.1} parent=79 // pred_region
              %s2675 = sshrl.u32 %s2662, 3
              // While loop
              $region89: #{autoencoder_forward.1} parent=87 // loop_pre_header
                _
              $region90: #{autoencoder_forward.1} parent=87 // loop_header
                %s2677 = sphi 0, %s2679
                %p2678 = scmp.ge.s32.totalorder %s2677, %s2675
                %s2682 = sphi 0, %s2703
                %s2683 = sphi %s2650, %s2706
                %s2684 = sphi %s2666, %s2707
              $region91: #{autoencoder_forward.1} parent=87 // loop_header_branch
                %2681 = sbr.rel (%p2678) target = $region95
              $region92: #{autoencoder_forward.1} parent=87 // loop_body
                %v2685 = vld [vmem:[%s2683] sm:$0xff]
                %2686 = vst [vmem:[%s2684] sm:$0xff] %v2685
                %v2687 = vld [vmem:[%s2683 + $0x8] sm:$0xff]
                %2688 = vst [vmem:[%s2684 + $0x8] sm:$0xff] %v2687
                %v2689 = vld [vmem:[%s2683 + $0x10] sm:$0xff]
                %2690 = vst [vmem:[%s2684 + $0x10] sm:$0xff] %v2689
                %v2691 = vld [vmem:[%s2683 + $0x18] sm:$0xff]
                %2692 = vst [vmem:[%s2684 + $0x18] sm:$0xff] %v2691
                %v2693 = vld [vmem:[%s2683 + $0x20] sm:$0xff]
                %2694 = vst [vmem:[%s2684 + $0x20] sm:$0xff] %v2693
                %v2695 = vld [vmem:[%s2683 + $0x28] sm:$0xff]
                %2696 = vst [vmem:[%s2684 + $0x28] sm:$0xff] %v2695
                %v2697 = vld [vmem:[%s2683 + $0x30] sm:$0xff]
                %2698 = vst [vmem:[%s2684 + $0x30] sm:$0xff] %v2697
                %v2699 = vld [vmem:[%s2683 + $0x38] sm:$0xff]
                %2700 = vst [vmem:[%s2684 + $0x38] sm:$0xff] %v2699
                %s2701 = sadd.s32 1, %s2682
                %p2702 = scmp.ge.s32.totalorder %s2701, %s2675
                %s2703 = scalar_select %p2702, 0, %s2701
                %s2704 = smul.u32 %s2703, 64
                %s2705 = smul.u32 %s2703, 64
                %s2706 = scalar_lea.vmem %s2650, %s2704 [#allocation2]
                %s2707 = scalar_lea.vmem %s2666, %s2705
              $region93: #{autoencoder_forward.1} parent=87 // loop_footer
                %s2679 = sadd.s32 %s2677, 1
              $region94: #{autoencoder_forward.1} parent=87 // loop_footer_branch
                %2676 = sbr.rel target = $region90
              $region95: #{autoencoder_forward.1} parent=87 // loop_exit
                _
              %s2708 = sshrl.u32 %s2662, 3
              %s2709 = sand.u32 %s2662, 7
              %s2710 = smul.u32 %s2708, 8
              %s2711 = smul.u32 8, %s2710
              %s2712 = scalar_lea.vmem %s2650, %s2711 [#allocation2]
              %s2713 = smul.u32 8, %s2710
              %s2714 = scalar_lea.vmem %s2666, %s2713
              // While loop
              $region96: #{autoencoder_forward.1} parent=87 // loop_pre_header
                _
              $region97: #{autoencoder_forward.1} parent=87 // loop_header
                %s2716 = sphi 0, %s2718
                %p2717 = scmp.ge.s32.totalorder %s2716, %s2709
                %s2721 = sphi 0, %s2728
                %s2722 = sphi %s2712, %s2731
                %s2723 = sphi %s2714, %s2732
              $region98: #{autoencoder_forward.1} parent=87 // loop_header_branch
                %2720 = sbr.rel (%p2717) target = $region102
              $region99: #{autoencoder_forward.1} parent=87 // loop_body
                %v2724 = vld [vmem:[%s2722] sm:$0xff]
                %2725 = vst [vmem:[%s2723] sm:$0xff] %v2724
                %s2726 = sadd.s32 1, %s2721
                %p2727 = scmp.ge.s32.totalorder %s2726, %s2709
                %s2728 = scalar_select %p2727, 0, %s2726
                %s2729 = smul.u32 %s2728, 8
                %s2730 = smul.u32 %s2728, 8
                %s2731 = scalar_lea.vmem %s2712, %s2729 [#allocation2]
                %s2732 = scalar_lea.vmem %s2714, %s2730
              $region100: #{autoencoder_forward.1} parent=87 // loop_footer
                %s2718 = sadd.s32 %s2716, 1
              $region101: #{autoencoder_forward.1} parent=87 // loop_footer_branch
                %2715 = sbr.rel target = $region97
              $region102: #{autoencoder_forward.1} parent=87 // loop_exit
                _
            $region88: #{autoencoder_forward.1} parent=79 // pred_fallthru
              _
          $region80: #{autoencoder_forward.1} parent=75 // pred_fallthru
            _
          %2795 = vnop
        $region76: #{autoencoder_forward.1} parent=71 // pred_fallthru
          _
        // Predicated region
        $region125: #{autoencoder_forward.1} parent=71 // pred_check
          %p2796 = pneg %p351
        $region126: #{autoencoder_forward.1} parent=71 // pred_check_branch
          %2798 = sbr.rel (%p2796) target = $region128
        $region127: #{autoencoder_forward.1} parent=71 // pred_region
          %s2799 = smul.u32 8, %s29
          %s2800 = ssub.s32 25, %s2799
          %p2801 = scmp.lt.s32.totalorder %s2800, 8
          %s2802 = scalar_select %p2801, %s2800, 8
          %s2803 = smul.u32 64, %s2802
          %s2804 = smul.u32 %s2803, 6
          %s2806 = ssub.s32 3072, %s2804
          %2807 = vsyncadd %s2652, %s2806
          %p2808 = scmp.ne.s32.totalorder 0, %s2804
          %s2809 = smul.addr %s2799, 6
          %s2810 = smul.addr %s2809, 64
          %s2811 = scalar_lea.hbm %s14, %s2810
          %s2812 = smul.u32 24, %s2802
          %s2813 = sshll.u32 %s2655, 4
          %s2814 = int_to_ptr.vmem [resolvable:$true] %s2813
          %s2815 = sshll.u32 %s2812, 4
          %2819 = dma.vmem_to_hbm [thread:$0]  (%p2808), %s2814, %s2815, %s2811, %s2652, 384, 384, 24
        $region128: #{autoencoder_forward.1} parent=71 // pred_fallthru
          _
      $region72: #{autoencoder_forward.1} parent=5 // pred_fallthru
        _
      %p2820 = scmp.le.s32.totalorder 2, %s24
      // Predicated region
      $region129: #{autoencoder_forward.1} parent=5 // pred_check
        %p2821 = pneg %p2820
      $region130: #{autoencoder_forward.1} parent=5 // pred_check_branch
        %2823 = sbr.rel (%p2821) target = $region132
      $region131: #{autoencoder_forward.1} parent=5 // pred_region
        %s2824 = ssub.s32 %s24, 2
        // Predicated region
        $region133: #{autoencoder_forward.1} parent=131 // pred_check
          %p2825 = pneg %p331
        $region134: #{autoencoder_forward.1} parent=131 // pred_check_branch
          %2827 = sbr.rel (%p2825) target = $region136
        $region135: #{autoencoder_forward.1} parent=131 // pred_region
          %s2828 = sand.u32 %s316, 1
          %s2829 = sand.u32 %s316, 1
          %s2830 = smul.addr %s2829, 64
          %s2831 = scalar_lea.vmem [#allocation2], %s2830
        $region136: #{autoencoder_forward.1} parent=131 // pred_fallthru
          _
        // Predicated region
        $region137: #{autoencoder_forward.1} parent=131 // pred_check
          %p2832 = pneg %p357
        $region138: #{autoencoder_forward.1} parent=131 // pred_check_branch
          %2834 = sbr.rel (%p2832) target = $region140
        $region139: #{autoencoder_forward.1} parent=131 // pred_region
          %s2835 = sand.u32 %s342, 1
          %s2836 = scalar_lea.sflag [#allocation4], %s2835
          %s2837 = sand.u32 %s342, 1
          %s2838 = smul.addr %s2837, 192
          %s2839 = scalar_lea.vmem [#allocation3], %s2838
          %2840 = dma.done %s2836, 3072
        $region140: #{autoencoder_forward.1} parent=131 // pred_fallthru
          _
      $region132: #{autoencoder_forward.1} parent=5 // pred_fallthru
        _
    $region6: #{autoencoder_forward.1} parent=1 // loop_footer
      %s28 = sadd.s32 1, %s24
    $region7: #{autoencoder_forward.1} parent=1 // loop_footer_branch
      %23 = sbr.rel target = $region3
    $region8: #{autoencoder_forward.1} parent=1 // loop_exit
      _
    %2841 = vsyncpa [#allocation4], 1
    %s2842 = scalar_lea.sflag [#allocation4], 1
    %2843 = vsyncpa %s2842, 1

</llo_original>
